<compile_context>
chip_gen: v7x
topology: tpu7x:2x2x1
jax: 0.10.0
libtpu: 0.0.40
codegen_flags: <defaults>
</compile_context>

<pallas_src>
import functools

import jax
import jax.numpy as jnp
from jax.experimental import pallas as pl
from jax.experimental.pallas import tpu as pltpu

IN_CH = 4      # conv input channels  (fixed by the module)
CONV_CH = 16   # conv output channels (fixed by the module)


def cnn_lstm_kernel(x_ref, cw_ref, cb_ref, wp_ref, gb_ref, clsw_ref, clsb_ref,
                    out_ref, *, conv_dtype, ws, n_strips):
    """One batch tile.

    x_ref    : (4, Wp, TB) f32  VMEM  (channel, window, batch-on-lanes)
    cw_ref   : (4, 16)     f32  SMEM  conv weight (in_ch, out_ch)
    cb_ref   : (16, 1)     f32  VMEM  conv bias column
    wp_ref   : (6H, 16)    bf16 VMEM  packed gate weights [i_f;i_b;g_f;g_b;o_f;o_b]
    gb_ref   : (6H, 1)     f32  VMEM  packed gate bias column
    clsw_ref : (1, 2H)     bf16 VMEM  classifier weight [w_fwd | w_bwd]
    clsb_ref : (1,)        f32  SMEM  classifier bias
    out_ref  : (1, 1, TB)  f32  VMEM  lane-dense output row for this tile
    """
    tb = x_ref.shape[2]

    # Hoist + splat the 64 conv-weight scalars once per tile (outside the
    # window loop), cast to the conv compute dtype (bf16 on v6e/v7x, f32 v5e).
    wsc = [[jnp.broadcast_to(cw_ref[d, c], (1, 1)).astype(conv_dtype)
            for c in range(CONV_CH)] for d in range(IN_CH)]

    # Conv1d(k=1) + MaxPool over the window, strip-mined so only one (ws, TB)
    # slab per input channel is live at a time (bounded live ranges, no spills
    # at the module's real window size).  The running max stays in registers.
    def strip_body(s, run_max):
        w0 = pl.multiple_of(s * ws, ws)
        xs = [x_ref[d, pl.ds(w0, ws), :].astype(conv_dtype)
              for d in range(IN_CH)]                               # 4 x (ws, TB)
        rows = []
        for c in range(CONV_CH):
            h_c = (wsc[0][c] * xs[0] + wsc[1][c] * xs[1]
                   + wsc[2][c] * xs[2] + wsc[3][c] * xs[3])        # (ws, TB)
            rows.append(jnp.max(h_c, axis=0, keepdims=True).astype(jnp.float32))
        strip_max = jnp.concatenate(rows, axis=0)                  # (16, TB) f32
        return jnp.maximum(run_max, strip_max)

    init = jnp.full((CONV_CH, tb), -jnp.inf, jnp.float32)
    if n_strips == 1:
        run_max = strip_body(0, init)
    else:
        run_max = jax.lax.fori_loop(0, n_strips, strip_body, init)

    # Bias after the pool and sigmoid after the pool (both exact); stay in f32.
    pooled = jax.nn.sigmoid(run_max + cb_ref[...])                 # (16, TB)
    # TODO(synk): nn.Dropout(p=0.01) is identity at inference; not modeled.

    # Fused bidirectional LSTM step (h0 = c0 = 0): one packed gate matmul, then
    # the f32 gate bias (largest additive terms kept out of bf16).
    gates = jnp.dot(wp_ref[...], pooled.astype(jnp.bfloat16),
                    preferred_element_type=jnp.float32) + gb_ref[...]   # (6H, TB)
    two_h = clsw_ref.shape[1]
    i_g = jax.nn.sigmoid(gates[0:two_h, :])                        # [i_f; i_b]
    g_g = jnp.tanh(gates[two_h:2 * two_h, :])                      # [g_f; g_b]
    o_g = jax.nn.sigmoid(gates[2 * two_h:3 * two_h, :])            # [o_f; o_b]
    # c = i*g (forget gate * c0 == 0 drops out); h = o*tanh(c); act2 = tanh.
    hidden = jnp.tanh(o_g * jnp.tanh(i_g * g_g))                   # (2H, TB)

    # Linear(2H -> 1) + Tanh, produced directly as a lane-dense row.
    y = jnp.dot(clsw_ref[...], hidden.astype(jnp.bfloat16),
                preferred_element_type=jnp.float32) + clsb_ref[0]  # (1, TB)
    out_ref[0] = jnp.tanh(y)


def _round_up(x, m):
    return ((x + m - 1) // m) * m


def _conv_dtype_for(device_kind):
    k = device_kind.lower()
    # v6e / v7x have a bf16-capable VPU: run the conv/pool multiplies in bf16.
    # v5e (and older) do not -- keep the conv in f32 there (MXU stays bf16).
    if "v6" in k or "v7" in k or "7x" in k:
        return jnp.bfloat16
    return jnp.float32


def _tile_plan(b, w, hidden, device_kind, conv_dtype, batch_tile=None):
    """Pick a lane-dense batch tile and an explicit VMEM limit per generation."""
    k = device_kind.lower()
    is_v7 = "v7" in k or "7x" in k
    # Physical VMEM: 64 MiB/TensorCore on v7x, 128 MiB on v5e/v6e; keep headroom.
    vmem_cap = (48 << 20) if is_v7 else (100 << 20)

    def bytes_needed(tb):
        x_dbuf = 2 * IN_CH * w * tb * 4                        # double-buffered x block
        lstm_tmp = (6 * hidden * 5 + 4 * CONV_CH) * tb * 4     # gate/hidden temporaries
        return x_dbuf + lstm_tmp + (2 << 20)

    if batch_tile is not None:
        tb = max(128, _round_up(batch_tile, 128))
    else:
        # Register-pressure cap on the conv carry/slabs; VMEM cap on the rest.
        tb = 2048 if conv_dtype == jnp.bfloat16 else 1024
        while tb > 128 and bytes_needed(tb) > (vmem_cap * 3) // 4:
            tb -= 128
        tb = max(tb, 128)
        tb = min(tb, _round_up(b, 128))
        if is_v7 and b > 128:
            # Keep >= 2 batch tiles so both TensorCores get work.
            tb = min(tb, _round_up((b + 1) // 2, 128))
    vmem_limit = min(vmem_cap, max(bytes_needed(tb) + (8 << 20), 32 << 20))
    return tb, int(vmem_limit)


def _pick_ws(w, tb, conv_bytes):
    """Window-strip size: keep ~8 vregs per input-channel slab in registers."""
    budget_elems = (8 * 4096) // conv_bytes
    ws = (budget_elems // max(tb, 1)) // 8 * 8
    ws = max(8, min(ws, 256))
    return min(ws, _round_up(w, 8))


def cnn_lstm_forward(x, packed, *, channels_first=False, batch_tile=None):
    """Forward pass.

    x: (B, W, 4) float32 (module layout), or (4, W, B) if channels_first=True
       -- the latter lets upstream producers skip the HBM transpose pass.
    Returns (B, 1) float32.
    """
    cw, cb, wp, gb, clsw, clsb = packed
    if channels_first:
        xt = x.astype(jnp.float32)                                  # (4, W, B)
    else:
        # TODO(synk): prefer producing (channels, window, batch) upstream; this
        # transpose is a separate XLA pass that re-reads/writes all of x in HBM.
        xt = jnp.transpose(x, (2, 1, 0)).astype(jnp.float32)
    d, w, b = xt.shape
    assert d == IN_CH
    six_h = wp.shape[0]
    two_h = clsw.shape[1]
    hidden = two_h // 2

    device_kind = jax.devices()[0].device_kind
    conv_dtype = _conv_dtype_for(device_kind)
    conv_bytes = 2 if conv_dtype == jnp.bfloat16 else 4
    tb, vmem_limit = _tile_plan(b, w, hidden, device_kind, conv_dtype, batch_tile)
    ws = _pick_ws(w, tb, conv_bytes)

    # Pad the window to a strip multiple by REPLICATING the last column (exact
    # under a max-pool), and pad the batch to a lane-dense tile multiple.
    w_pad = _round_up(w, ws)
    if w_pad != w:
        xt = jnp.pad(xt, ((0, 0), (0, w_pad - w), (0, 0)), mode="edge")
    b_pad = _round_up(b, tb)
    if b_pad != b:
        xt = jnp.pad(xt, ((0, 0), (0, 0), (0, b_pad - b)))
    num_tiles = b_pad // tb
    n_strips = w_pad // ws

    flops = b_pad * (2 * w_pad * IN_CH * CONV_CH + 2 * CONV_CH * six_h + 2 * two_h)
    transcendentals = b_pad * (CONV_CH + six_h + 2 * two_h + 1)
    bytes_accessed = (xt.size * 4 + wp.size * 2 + clsw.size * 2 + cw.size * 4
                      + cb.size * 4 + gb.size * 4 + 4 + b_pad * 4)

    kernel = functools.partial(cnn_lstm_kernel, conv_dtype=conv_dtype,
                               ws=ws, n_strips=n_strips)

    out = pl.pallas_call(
        kernel,
        out_shape=jax.ShapeDtypeStruct((num_tiles, 1, tb), jnp.float32),
        grid=(num_tiles,),
        in_specs=[
            pl.BlockSpec((IN_CH, w_pad, tb), lambda i: (0, 0, i)),     # x tile
            pl.BlockSpec(memory_space=pltpu.MemorySpace.SMEM),         # conv w
            pl.BlockSpec((CONV_CH, 1), lambda i: (0, 0)),              # conv b
            pl.BlockSpec((six_h, CONV_CH), lambda i: (0, 0)),          # gate w
            pl.BlockSpec((six_h, 1), lambda i: (0, 0)),                # gate b
            pl.BlockSpec((1, two_h), lambda i: (0, 0)),                # cls w
            pl.BlockSpec(memory_space=pltpu.MemorySpace.SMEM),         # cls b
        ],
        out_specs=pl.BlockSpec((1, 1, tb), lambda i: (i, 0, 0)),
        compiler_params=pltpu.CompilerParams(
            dimension_semantics=("parallel",),
            vmem_limit_bytes=int(vmem_limit)),
        cost_estimate=pl.CostEstimate(
            flops=int(flops), transcendentals=int(transcendentals),
            bytes_accessed=int(bytes_accessed)),
    )(xt, cw, cb, wp, gb, clsw, clsb)

    return out.reshape(-1)[:b].reshape(b, 1)


def init_torch_params(key, hidden=32):
    """Random parameters in PyTorch's native layouts (all float32)."""
    ks = jax.random.split(key, 10)
    s = 0.1
    p = dict(
        conv_w=s * jax.random.normal(ks[0], (CONV_CH, IN_CH), jnp.float32),
        conv_b=s * jax.random.normal(ks[1], (CONV_CH,), jnp.float32),
        w_ih_f=s * jax.random.normal(ks[2], (4 * hidden, CONV_CH), jnp.float32),
        b_ih_f=s * jax.random.normal(ks[3], (4 * hidden,), jnp.float32),
        b_hh_f=s * jax.random.normal(ks[4], (4 * hidden,), jnp.float32),
        w_ih_b=s * jax.random.normal(ks[5], (4 * hidden, CONV_CH), jnp.float32),
        b_ih_b=s * jax.random.normal(ks[6], (4 * hidden,), jnp.float32),
        b_hh_b=s * jax.random.normal(ks[7], (4 * hidden,), jnp.float32),
        cls_w=s * jax.random.normal(ks[8], (1, 2 * hidden), jnp.float32),
        cls_b=s * jax.random.normal(ks[9], (1,), jnp.float32),
    )
    # TODO(synk): the LSTM also owns W_hh_{fwd,bwd}; with seq_len==1 and
    # h0=c0=0 they never affect the forward pass, so they are not materialized.
    return p


def pack_params(p):
    """Pack PyTorch-layout params into the kernel's fused operands."""
    hidden = p['w_ih_f'].shape[0] // 4
    bias_f = p['b_ih_f'] + p['b_hh_f']
    bias_b = p['b_ih_b'] + p['b_hh_b']

    def gate(arr, g):                      # PyTorch gate order: i, f, g, o
        return arr[g * hidden:(g + 1) * hidden]

    # Gate-major, direction-interleaved rows: [i_f; i_b; g_f; g_b; o_f; o_b].
    # The forget gate is dropped (it only multiplies c0 == 0).
    w_rows = jnp.concatenate([
        gate(p['w_ih_f'], 0), gate(p['w_ih_b'], 0),
        gate(p['w_ih_f'], 2), gate(p['w_ih_b'], 2),
        gate(p['w_ih_f'], 3), gate(p['w_ih_b'], 3)], axis=0)       # (6H, 16)
    b_rows = jnp.concatenate([
        gate(bias_f, 0), gate(bias_b, 0),
        gate(bias_f, 2), gate(bias_b, 2),
        gate(bias_f, 3), gate(bias_b, 3)], axis=0)                 # (6H,)

    return (
        p['conv_w'].T.astype(jnp.float32),         # (4, 16)  SMEM scalars
        p['conv_b'].astype(jnp.float32)[:, None],  # (16, 1)  f32 conv-bias column
        w_rows.astype(jnp.bfloat16),               # (6H, 16) bf16 packed gate weights
        b_rows.astype(jnp.float32)[:, None],       # (6H, 1)  f32 gate-bias column
        p['cls_w'].astype(jnp.bfloat16),           # (1, 2H)  [w_fwd | w_bwd]
        p['cls_b'].astype(jnp.float32),            # (1,)     SMEM scalar
    )


def reference_forward_f32(x, p):
    """Pure-f32 JAX transcription of the PyTorch module's forward pass."""
    hidden = p['w_ih_f'].shape[0] // 4
    h = jax.nn.sigmoid(jnp.einsum('bwd,cd->bwc', x, p['conv_w']) + p['conv_b'])
    pooled = jnp.max(h, axis=1)                                    # (B, 16)

    def lstm_dir(w_ih, b_ih, b_hh):
        g = pooled @ w_ih.T + b_ih + b_hh                          # (B, 4H)
        i = jax.nn.sigmoid(g[:, 0:hidden])
        gg = jnp.tanh(g[:, 2 * hidden:3 * hidden])
        o = jax.nn.sigmoid(g[:, 3 * hidden:4 * hidden])
        c = i * gg                                                 # f * c0 == 0
        return o * jnp.tanh(c)

    h_f = lstm_dir(p['w_ih_f'], p['b_ih_f'], p['b_hh_f'])
    h_b = lstm_dir(p['w_ih_b'], p['b_ih_b'], p['b_hh_b'])
    h2 = jnp.tanh(jnp.concatenate([h_f, h_b], axis=-1))            # (B, 2H)
    return jnp.tanh(h2 @ p['cls_w'].T + p['cls_b'])                # (B, 1)


def reference_forward_packed(x, packed, conv_dtype=jnp.float32):
    """Mirrors the kernel math (same op order + dtype casts) outside Pallas."""
    cw, cb, wp, gb, clsw, clsb = packed
    xt = jnp.transpose(x, (2, 1, 0)).astype(conv_dtype)            # (4, W, B)
    rows = []
    for c in range(CONV_CH):
        wdc = [cw[d, c].astype(conv_dtype) for d in range(IN_CH)]
        h_c = wdc[0] * xt[0] + wdc[1] * xt[1] + wdc[2] * xt[2] + wdc[3] * xt[3]
        rows.append(jnp.max(h_c, axis=0, keepdims=True).astype(jnp.float32))
    zmax = jnp.concatenate(rows, axis=0)                           # (16, B)
    pooled = jax.nn.sigmoid(zmax + cb)                             # (16, B)
    gates = jnp.dot(wp, pooled.astype(jnp.bfloat16),
                    preferred_element_type=jnp.float32) + gb       # (6H, B)
    two_h = clsw.shape[1]
    i = jax.nn.sigmoid(gates[0:two_h])
    g = jnp.tanh(gates[two_h:2 * two_h])
    o = jax.nn.sigmoid(gates[2 * two_h:3 * two_h])
    hidden = jnp.tanh(o * jnp.tanh(i * g))
    y = jnp.dot(clsw, hidden.astype(jnp.bfloat16),
                preferred_element_type=jnp.float32) + clsb[0]
    return jnp.tanh(y).T                                           # (B, 1)


if __name__ == "__main__":
    key = jax.random.PRNGKey(0)
    kx, kp = jax.random.split(key)

    batch, window, dim, hidden = 2, 16, 4, 32    # small shapes (module: 660/4/660)
    x = jax.random.normal(kx, (batch, window, dim), jnp.float32)
    torch_params = init_torch_params(kp, hidden=hidden)
    packed = pack_params(torch_params)

    # Module-layout entry point (B, W, 4) ...
    out = jax.block_until_ready(cnn_lstm_forward(x, packed))
    assert out.shape == (batch, 1)
    # ... and the preferred producer layout (4, W, B): no wrapper transpose pass.
    out_cf = jax.block_until_ready(
        cnn_lstm_forward(jnp.transpose(x, (2, 1, 0)), packed, channels_first=True))
    assert jnp.allclose(out, out_cf, atol=1e-6, rtol=1e-6)

    conv_dtype = _conv_dtype_for(jax.devices()[0].device_kind)
    ref_exact = reference_forward_packed(x, packed, conv_dtype=conv_dtype)
    ref_f32 = reference_forward_f32(x, torch_params)
    assert jnp.allclose(out, ref_exact, atol=5e-3, rtol=1e-3)
    assert jnp.allclose(out, ref_f32, atol=2e-2, rtol=1e-2)

    print("KERNEL_OK")
</pallas_src>

<mosaic_0001>
module attributes {stable_mosaic.version = 11 : i64} {
  func.func @cnn_lstm_kernel(%arg0: i32, %arg1: memref<4x16x128xf32, #tpu.memory_space<vmem>>, %arg2: memref<4x16xf32, #tpu.memory_space<smem>>, %arg3: memref<16x1xf32, #tpu.memory_space<vmem>>, %arg4: memref<192x16xbf16, #tpu.memory_space<vmem>>, %arg5: memref<192x1xf32, #tpu.memory_space<vmem>>, %arg6: memref<1x64xbf16, #tpu.memory_space<vmem>>, %arg7: memref<1xf32, #tpu.memory_space<smem>>, %arg8: memref<1x1x128xf32, #tpu.memory_space<vmem>>) attributes {dimension_semantics = [#tpu.dimension_semantics<parallel>], iteration_bounds = array<i64: 1>, scalar_prefetch = 0 : i64, scratch_operands = 0 : i64, tpu.core_type = #tpu.core_type<tc>, window_params = [{transform_indices = @transform_0, window_bounds = array<i64: 4, 16, 128>}, {transform_indices = @transform_1, window_bounds = array<i64: 4, 16>}, {pipeline_mode = #tpu.pipeline_mode<synchronous>, transform_indices = @transform_2, window_bounds = array<i64: 16, 1>}, {pipeline_mode = #tpu.pipeline_mode<synchronous>, transform_indices = @transform_3, window_bounds = array<i64: 192, 16>}, {pipeline_mode = #tpu.pipeline_mode<synchronous>, transform_indices = @transform_4, window_bounds = array<i64: 192, 1>}, {pipeline_mode = #tpu.pipeline_mode<synchronous>, transform_indices = @transform_5, window_bounds = array<i64: 1, 64>}, {transform_indices = @transform_6, window_bounds = array<i64: 1>}, {transform_indices = @transform_7, window_bounds = array<i64: 1, 1, 128>}]} {
    %c0 = arith.constant 0 : index
    %c0_0 = arith.constant 0 : index
    %0 = memref.load %arg2[%c0, %c0_0] : memref<4x16xf32, #tpu.memory_space<smem>>
    %1 = vector.broadcast %0 : f32 to vector<1x1xf32>
    %c0_1 = arith.constant 0 : index
    %c1 = arith.constant 1 : index
    %2 = memref.load %arg2[%c0_1, %c1] : memref<4x16xf32, #tpu.memory_space<smem>>
    %3 = vector.broadcast %2 : f32 to vector<1x1xf32>
    %c0_2 = arith.constant 0 : index
    %c2 = arith.constant 2 : index
    %4 = memref.load %arg2[%c0_2, %c2] : memref<4x16xf32, #tpu.memory_space<smem>>
    %5 = vector.broadcast %4 : f32 to vector<1x1xf32>
    %c0_3 = arith.constant 0 : index
    %c3 = arith.constant 3 : index
    %6 = memref.load %arg2[%c0_3, %c3] : memref<4x16xf32, #tpu.memory_space<smem>>
    %7 = vector.broadcast %6 : f32 to vector<1x1xf32>
    %c0_4 = arith.constant 0 : index
    %c4 = arith.constant 4 : index
    %8 = memref.load %arg2[%c0_4, %c4] : memref<4x16xf32, #tpu.memory_space<smem>>
    %9 = vector.broadcast %8 : f32 to vector<1x1xf32>
    %c0_5 = arith.constant 0 : index
    %c5 = arith.constant 5 : index
    %10 = memref.load %arg2[%c0_5, %c5] : memref<4x16xf32, #tpu.memory_space<smem>>
    %11 = vector.broadcast %10 : f32 to vector<1x1xf32>
    %c0_6 = arith.constant 0 : index
    %c6 = arith.constant 6 : index
    %12 = memref.load %arg2[%c0_6, %c6] : memref<4x16xf32, #tpu.memory_space<smem>>
    %13 = vector.broadcast %12 : f32 to vector<1x1xf32>
    %c0_7 = arith.constant 0 : index
    %c7 = arith.constant 7 : index
    %14 = memref.load %arg2[%c0_7, %c7] : memref<4x16xf32, #tpu.memory_space<smem>>
    %15 = vector.broadcast %14 : f32 to vector<1x1xf32>
    %c0_8 = arith.constant 0 : index
    %c8 = arith.constant 8 : index
    %16 = memref.load %arg2[%c0_8, %c8] : memref<4x16xf32, #tpu.memory_space<smem>>
    %17 = vector.broadcast %16 : f32 to vector<1x1xf32>
    %c0_9 = arith.constant 0 : index
    %c9 = arith.constant 9 : index
    %18 = memref.load %arg2[%c0_9, %c9] : memref<4x16xf32, #tpu.memory_space<smem>>
    %19 = vector.broadcast %18 : f32 to vector<1x1xf32>
    %c0_10 = arith.constant 0 : index
    %c10 = arith.constant 10 : index
    %20 = memref.load %arg2[%c0_10, %c10] : memref<4x16xf32, #tpu.memory_space<smem>>
    %21 = vector.broadcast %20 : f32 to vector<1x1xf32>
    %c0_11 = arith.constant 0 : index
    %c11 = arith.constant 11 : index
    %22 = memref.load %arg2[%c0_11, %c11] : memref<4x16xf32, #tpu.memory_space<smem>>
    %23 = vector.broadcast %22 : f32 to vector<1x1xf32>
    %c0_12 = arith.constant 0 : index
    %c12 = arith.constant 12 : index
    %24 = memref.load %arg2[%c0_12, %c12] : memref<4x16xf32, #tpu.memory_space<smem>>
    %25 = vector.broadcast %24 : f32 to vector<1x1xf32>
    %c0_13 = arith.constant 0 : index
    %c13 = arith.constant 13 : index
    %26 = memref.load %arg2[%c0_13, %c13] : memref<4x16xf32, #tpu.memory_space<smem>>
    %27 = vector.broadcast %26 : f32 to vector<1x1xf32>
    %c0_14 = arith.constant 0 : index
    %c14 = arith.constant 14 : index
    %28 = memref.load %arg2[%c0_14, %c14] : memref<4x16xf32, #tpu.memory_space<smem>>
    %29 = vector.broadcast %28 : f32 to vector<1x1xf32>
    %c0_15 = arith.constant 0 : index
    %c15 = arith.constant 15 : index
    %30 = memref.load %arg2[%c0_15, %c15] : memref<4x16xf32, #tpu.memory_space<smem>>
    %31 = vector.broadcast %30 : f32 to vector<1x1xf32>
    %c1_16 = arith.constant 1 : index
    %c0_17 = arith.constant 0 : index
    %32 = memref.load %arg2[%c1_16, %c0_17] : memref<4x16xf32, #tpu.memory_space<smem>>
    %33 = vector.broadcast %32 : f32 to vector<1x1xf32>
    %c1_18 = arith.constant 1 : index
    %c1_19 = arith.constant 1 : index
    %34 = memref.load %arg2[%c1_18, %c1_19] : memref<4x16xf32, #tpu.memory_space<smem>>
    %35 = vector.broadcast %34 : f32 to vector<1x1xf32>
    %c1_20 = arith.constant 1 : index
    %c2_21 = arith.constant 2 : index
    %36 = memref.load %arg2[%c1_20, %c2_21] : memref<4x16xf32, #tpu.memory_space<smem>>
    %37 = vector.broadcast %36 : f32 to vector<1x1xf32>
    %c1_22 = arith.constant 1 : index
    %c3_23 = arith.constant 3 : index
    %38 = memref.load %arg2[%c1_22, %c3_23] : memref<4x16xf32, #tpu.memory_space<smem>>
    %39 = vector.broadcast %38 : f32 to vector<1x1xf32>
    %c1_24 = arith.constant 1 : index
    %c4_25 = arith.constant 4 : index
    %40 = memref.load %arg2[%c1_24, %c4_25] : memref<4x16xf32, #tpu.memory_space<smem>>
    %41 = vector.broadcast %40 : f32 to vector<1x1xf32>
    %c1_26 = arith.constant 1 : index
    %c5_27 = arith.constant 5 : index
    %42 = memref.load %arg2[%c1_26, %c5_27] : memref<4x16xf32, #tpu.memory_space<smem>>
    %43 = vector.broadcast %42 : f32 to vector<1x1xf32>
    %c1_28 = arith.constant 1 : index
    %c6_29 = arith.constant 6 : index
    %44 = memref.load %arg2[%c1_28, %c6_29] : memref<4x16xf32, #tpu.memory_space<smem>>
    %45 = vector.broadcast %44 : f32 to vector<1x1xf32>
    %c1_30 = arith.constant 1 : index
    %c7_31 = arith.constant 7 : index
    %46 = memref.load %arg2[%c1_30, %c7_31] : memref<4x16xf32, #tpu.memory_space<smem>>
    %47 = vector.broadcast %46 : f32 to vector<1x1xf32>
    %c1_32 = arith.constant 1 : index
    %c8_33 = arith.constant 8 : index
    %48 = memref.load %arg2[%c1_32, %c8_33] : memref<4x16xf32, #tpu.memory_space<smem>>
    %49 = vector.broadcast %48 : f32 to vector<1x1xf32>
    %c1_34 = arith.constant 1 : index
    %c9_35 = arith.constant 9 : index
    %50 = memref.load %arg2[%c1_34, %c9_35] : memref<4x16xf32, #tpu.memory_space<smem>>
    %51 = vector.broadcast %50 : f32 to vector<1x1xf32>
    %c1_36 = arith.constant 1 : index
    %c10_37 = arith.constant 10 : index
    %52 = memref.load %arg2[%c1_36, %c10_37] : memref<4x16xf32, #tpu.memory_space<smem>>
    %53 = vector.broadcast %52 : f32 to vector<1x1xf32>
    %c1_38 = arith.constant 1 : index
    %c11_39 = arith.constant 11 : index
    %54 = memref.load %arg2[%c1_38, %c11_39] : memref<4x16xf32, #tpu.memory_space<smem>>
    %55 = vector.broadcast %54 : f32 to vector<1x1xf32>
    %c1_40 = arith.constant 1 : index
    %c12_41 = arith.constant 12 : index
    %56 = memref.load %arg2[%c1_40, %c12_41] : memref<4x16xf32, #tpu.memory_space<smem>>
    %57 = vector.broadcast %56 : f32 to vector<1x1xf32>
    %c1_42 = arith.constant 1 : index
    %c13_43 = arith.constant 13 : index
    %58 = memref.load %arg2[%c1_42, %c13_43] : memref<4x16xf32, #tpu.memory_space<smem>>
    %59 = vector.broadcast %58 : f32 to vector<1x1xf32>
    %c1_44 = arith.constant 1 : index
    %c14_45 = arith.constant 14 : index
    %60 = memref.load %arg2[%c1_44, %c14_45] : memref<4x16xf32, #tpu.memory_space<smem>>
    %61 = vector.broadcast %60 : f32 to vector<1x1xf32>
    %c1_46 = arith.constant 1 : index
    %c15_47 = arith.constant 15 : index
    %62 = memref.load %arg2[%c1_46, %c15_47] : memref<4x16xf32, #tpu.memory_space<smem>>
    %63 = vector.broadcast %62 : f32 to vector<1x1xf32>
    %c2_48 = arith.constant 2 : index
    %c0_49 = arith.constant 0 : index
    %64 = memref.load %arg2[%c2_48, %c0_49] : memref<4x16xf32, #tpu.memory_space<smem>>
    %65 = vector.broadcast %64 : f32 to vector<1x1xf32>
    %c2_50 = arith.constant 2 : index
    %c1_51 = arith.constant 1 : index
    %66 = memref.load %arg2[%c2_50, %c1_51] : memref<4x16xf32, #tpu.memory_space<smem>>
    %67 = vector.broadcast %66 : f32 to vector<1x1xf32>
    %c2_52 = arith.constant 2 : index
    %c2_53 = arith.constant 2 : index
    %68 = memref.load %arg2[%c2_52, %c2_53] : memref<4x16xf32, #tpu.memory_space<smem>>
    %69 = vector.broadcast %68 : f32 to vector<1x1xf32>
    %c2_54 = arith.constant 2 : index
    %c3_55 = arith.constant 3 : index
    %70 = memref.load %arg2[%c2_54, %c3_55] : memref<4x16xf32, #tpu.memory_space<smem>>
    %71 = vector.broadcast %70 : f32 to vector<1x1xf32>
    %c2_56 = arith.constant 2 : index
    %c4_57 = arith.constant 4 : index
    %72 = memref.load %arg2[%c2_56, %c4_57] : memref<4x16xf32, #tpu.memory_space<smem>>
    %73 = vector.broadcast %72 : f32 to vector<1x1xf32>
    %c2_58 = arith.constant 2 : index
    %c5_59 = arith.constant 5 : index
    %74 = memref.load %arg2[%c2_58, %c5_59] : memref<4x16xf32, #tpu.memory_space<smem>>
    %75 = vector.broadcast %74 : f32 to vector<1x1xf32>
    %c2_60 = arith.constant 2 : index
    %c6_61 = arith.constant 6 : index
    %76 = memref.load %arg2[%c2_60, %c6_61] : memref<4x16xf32, #tpu.memory_space<smem>>
    %77 = vector.broadcast %76 : f32 to vector<1x1xf32>
    %c2_62 = arith.constant 2 : index
    %c7_63 = arith.constant 7 : index
    %78 = memref.load %arg2[%c2_62, %c7_63] : memref<4x16xf32, #tpu.memory_space<smem>>
    %79 = vector.broadcast %78 : f32 to vector<1x1xf32>
    %c2_64 = arith.constant 2 : index
    %c8_65 = arith.constant 8 : index
    %80 = memref.load %arg2[%c2_64, %c8_65] : memref<4x16xf32, #tpu.memory_space<smem>>
    %81 = vector.broadcast %80 : f32 to vector<1x1xf32>
    %c2_66 = arith.constant 2 : index
    %c9_67 = arith.constant 9 : index
    %82 = memref.load %arg2[%c2_66, %c9_67] : memref<4x16xf32, #tpu.memory_space<smem>>
    %83 = vector.broadcast %82 : f32 to vector<1x1xf32>
    %c2_68 = arith.constant 2 : index
    %c10_69 = arith.constant 10 : index
    %84 = memref.load %arg2[%c2_68, %c10_69] : memref<4x16xf32, #tpu.memory_space<smem>>
    %85 = vector.broadcast %84 : f32 to vector<1x1xf32>
    %c2_70 = arith.constant 2 : index
    %c11_71 = arith.constant 11 : index
    %86 = memref.load %arg2[%c2_70, %c11_71] : memref<4x16xf32, #tpu.memory_space<smem>>
    %87 = vector.broadcast %86 : f32 to vector<1x1xf32>
    %c2_72 = arith.constant 2 : index
    %c12_73 = arith.constant 12 : index
    %88 = memref.load %arg2[%c2_72, %c12_73] : memref<4x16xf32, #tpu.memory_space<smem>>
    %89 = vector.broadcast %88 : f32 to vector<1x1xf32>
    %c2_74 = arith.constant 2 : index
    %c13_75 = arith.constant 13 : index
    %90 = memref.load %arg2[%c2_74, %c13_75] : memref<4x16xf32, #tpu.memory_space<smem>>
    %91 = vector.broadcast %90 : f32 to vector<1x1xf32>
    %c2_76 = arith.constant 2 : index
    %c14_77 = arith.constant 14 : index
    %92 = memref.load %arg2[%c2_76, %c14_77] : memref<4x16xf32, #tpu.memory_space<smem>>
    %93 = vector.broadcast %92 : f32 to vector<1x1xf32>
    %c2_78 = arith.constant 2 : index
    %c15_79 = arith.constant 15 : index
    %94 = memref.load %arg2[%c2_78, %c15_79] : memref<4x16xf32, #tpu.memory_space<smem>>
    %95 = vector.broadcast %94 : f32 to vector<1x1xf32>
    %c3_80 = arith.constant 3 : index
    %c0_81 = arith.constant 0 : index
    %96 = memref.load %arg2[%c3_80, %c0_81] : memref<4x16xf32, #tpu.memory_space<smem>>
    %97 = vector.broadcast %96 : f32 to vector<1x1xf32>
    %c3_82 = arith.constant 3 : index
    %c1_83 = arith.constant 1 : index
    %98 = memref.load %arg2[%c3_82, %c1_83] : memref<4x16xf32, #tpu.memory_space<smem>>
    %99 = vector.broadcast %98 : f32 to vector<1x1xf32>
    %c3_84 = arith.constant 3 : index
    %c2_85 = arith.constant 2 : index
    %100 = memref.load %arg2[%c3_84, %c2_85] : memref<4x16xf32, #tpu.memory_space<smem>>
    %101 = vector.broadcast %100 : f32 to vector<1x1xf32>
    %c3_86 = arith.constant 3 : index
    %c3_87 = arith.constant 3 : index
    %102 = memref.load %arg2[%c3_86, %c3_87] : memref<4x16xf32, #tpu.memory_space<smem>>
    %103 = vector.broadcast %102 : f32 to vector<1x1xf32>
    %c3_88 = arith.constant 3 : index
    %c4_89 = arith.constant 4 : index
    %104 = memref.load %arg2[%c3_88, %c4_89] : memref<4x16xf32, #tpu.memory_space<smem>>
    %105 = vector.broadcast %104 : f32 to vector<1x1xf32>
    %c3_90 = arith.constant 3 : index
    %c5_91 = arith.constant 5 : index
    %106 = memref.load %arg2[%c3_90, %c5_91] : memref<4x16xf32, #tpu.memory_space<smem>>
    %107 = vector.broadcast %106 : f32 to vector<1x1xf32>
    %c3_92 = arith.constant 3 : index
    %c6_93 = arith.constant 6 : index
    %108 = memref.load %arg2[%c3_92, %c6_93] : memref<4x16xf32, #tpu.memory_space<smem>>
    %109 = vector.broadcast %108 : f32 to vector<1x1xf32>
    %c3_94 = arith.constant 3 : index
    %c7_95 = arith.constant 7 : index
    %110 = memref.load %arg2[%c3_94, %c7_95] : memref<4x16xf32, #tpu.memory_space<smem>>
    %111 = vector.broadcast %110 : f32 to vector<1x1xf32>
    %c3_96 = arith.constant 3 : index
    %c8_97 = arith.constant 8 : index
    %112 = memref.load %arg2[%c3_96, %c8_97] : memref<4x16xf32, #tpu.memory_space<smem>>
    %113 = vector.broadcast %112 : f32 to vector<1x1xf32>
    %c3_98 = arith.constant 3 : index
    %c9_99 = arith.constant 9 : index
    %114 = memref.load %arg2[%c3_98, %c9_99] : memref<4x16xf32, #tpu.memory_space<smem>>
    %115 = vector.broadcast %114 : f32 to vector<1x1xf32>
    %c3_100 = arith.constant 3 : index
    %c10_101 = arith.constant 10 : index
    %116 = memref.load %arg2[%c3_100, %c10_101] : memref<4x16xf32, #tpu.memory_space<smem>>
    %117 = vector.broadcast %116 : f32 to vector<1x1xf32>
    %c3_102 = arith.constant 3 : index
    %c11_103 = arith.constant 11 : index
    %118 = memref.load %arg2[%c3_102, %c11_103] : memref<4x16xf32, #tpu.memory_space<smem>>
    %119 = vector.broadcast %118 : f32 to vector<1x1xf32>
    %c3_104 = arith.constant 3 : index
    %c12_105 = arith.constant 12 : index
    %120 = memref.load %arg2[%c3_104, %c12_105] : memref<4x16xf32, #tpu.memory_space<smem>>
    %121 = vector.broadcast %120 : f32 to vector<1x1xf32>
    %c3_106 = arith.constant 3 : index
    %c13_107 = arith.constant 13 : index
    %122 = memref.load %arg2[%c3_106, %c13_107] : memref<4x16xf32, #tpu.memory_space<smem>>
    %123 = vector.broadcast %122 : f32 to vector<1x1xf32>
    %c3_108 = arith.constant 3 : index
    %c14_109 = arith.constant 14 : index
    %124 = memref.load %arg2[%c3_108, %c14_109] : memref<4x16xf32, #tpu.memory_space<smem>>
    %125 = vector.broadcast %124 : f32 to vector<1x1xf32>
    %c3_110 = arith.constant 3 : index
    %c15_111 = arith.constant 15 : index
    %126 = memref.load %arg2[%c3_110, %c15_111] : memref<4x16xf32, #tpu.memory_space<smem>>
    %127 = vector.broadcast %126 : f32 to vector<1x1xf32>
    %cst = arith.constant 0xFF800000 : f32
    %128 = vector.broadcast %cst : f32 to vector<16x128xf32>
    %c0_i32 = arith.constant 0 : i32
    %129 = tpu.assume_multiple %c0_i32, 16 : i32
    %c0_112 = arith.constant 0 : index
    %130 = arith.index_cast %129 : i32 to index
    %c0_113 = arith.constant 0 : index
    %131 = vector.load %arg1[%c0_112, %130, %c0_113] : memref<4x16x128xf32, #tpu.memory_space<vmem>>, vector<1x16x128xf32>
    %132 = vector.shape_cast %131 : vector<1x16x128xf32> to vector<16x128xf32>
    %c1_114 = arith.constant 1 : index
    %133 = arith.index_cast %129 : i32 to index
    %c0_115 = arith.constant 0 : index
    %134 = vector.load %arg1[%c1_114, %133, %c0_115] : memref<4x16x128xf32, #tpu.memory_space<vmem>>, vector<1x16x128xf32>
    %135 = vector.shape_cast %134 : vector<1x16x128xf32> to vector<16x128xf32>
    %c2_116 = arith.constant 2 : index
    %136 = arith.index_cast %129 : i32 to index
    %c0_117 = arith.constant 0 : index
    %137 = vector.load %arg1[%c2_116, %136, %c0_117] : memref<4x16x128xf32, #tpu.memory_space<vmem>>, vector<1x16x128xf32>
    %138 = vector.shape_cast %137 : vector<1x16x128xf32> to vector<16x128xf32>
    %c3_118 = arith.constant 3 : index
    %139 = arith.index_cast %129 : i32 to index
    %c0_119 = arith.constant 0 : index
    %140 = vector.load %arg1[%c3_118, %139, %c0_119] : memref<4x16x128xf32, #tpu.memory_space<vmem>>, vector<1x16x128xf32>
    %141 = vector.shape_cast %140 : vector<1x16x128xf32> to vector<16x128xf32>
    %142 = vector.broadcast %1 : vector<1x1xf32> to vector<16x128xf32>
    %143 = arith.mulf %142, %132 : vector<16x128xf32>
    %144 = vector.broadcast %33 : vector<1x1xf32> to vector<16x128xf32>
    %145 = arith.mulf %144, %135 : vector<16x128xf32>
    %146 = arith.addf %143, %145 : vector<16x128xf32>
    %147 = vector.broadcast %65 : vector<1x1xf32> to vector<16x128xf32>
    %148 = arith.mulf %147, %138 : vector<16x128xf32>
    %149 = arith.addf %146, %148 : vector<16x128xf32>
    %150 = vector.broadcast %97 : vector<1x1xf32> to vector<16x128xf32>
    %151 = arith.mulf %150, %141 : vector<16x128xf32>
    %152 = arith.addf %149, %151 : vector<16x128xf32>
    %cst_120 = arith.constant dense<0xFF800000> : vector<128xf32>
    %153 = vector.multi_reduction <maximumf>, %152, %cst_120 [0] : vector<16x128xf32> to vector<128xf32>
    %154 = vector.shape_cast %153 : vector<128xf32> to vector<1x128xf32>
    %155 = vector.broadcast %3 : vector<1x1xf32> to vector<16x128xf32>
    %156 = arith.mulf %155, %132 : vector<16x128xf32>
    %157 = vector.broadcast %35 : vector<1x1xf32> to vector<16x128xf32>
    %158 = arith.mulf %157, %135 : vector<16x128xf32>
    %159 = arith.addf %156, %158 : vector<16x128xf32>
    %160 = vector.broadcast %67 : vector<1x1xf32> to vector<16x128xf32>
    %161 = arith.mulf %160, %138 : vector<16x128xf32>
    %162 = arith.addf %159, %161 : vector<16x128xf32>
    %163 = vector.broadcast %99 : vector<1x1xf32> to vector<16x128xf32>
    %164 = arith.mulf %163, %141 : vector<16x128xf32>
    %165 = arith.addf %162, %164 : vector<16x128xf32>
    %cst_121 = arith.constant dense<0xFF800000> : vector<128xf32>
    %166 = vector.multi_reduction <maximumf>, %165, %cst_121 [0] : vector<16x128xf32> to vector<128xf32>
    %167 = vector.shape_cast %166 : vector<128xf32> to vector<1x128xf32>
    %168 = vector.broadcast %5 : vector<1x1xf32> to vector<16x128xf32>
    %169 = arith.mulf %168, %132 : vector<16x128xf32>
    %170 = vector.broadcast %37 : vector<1x1xf32> to vector<16x128xf32>
    %171 = arith.mulf %170, %135 : vector<16x128xf32>
    %172 = arith.addf %169, %171 : vector<16x128xf32>
    %173 = vector.broadcast %69 : vector<1x1xf32> to vector<16x128xf32>
    %174 = arith.mulf %173, %138 : vector<16x128xf32>
    %175 = arith.addf %172, %174 : vector<16x128xf32>
    %176 = vector.broadcast %101 : vector<1x1xf32> to vector<16x128xf32>
    %177 = arith.mulf %176, %141 : vector<16x128xf32>
    %178 = arith.addf %175, %177 : vector<16x128xf32>
    %cst_122 = arith.constant dense<0xFF800000> : vector<128xf32>
    %179 = vector.multi_reduction <maximumf>, %178, %cst_122 [0] : vector<16x128xf32> to vector<128xf32>
    %180 = vector.shape_cast %179 : vector<128xf32> to vector<1x128xf32>
    %181 = vector.broadcast %7 : vector<1x1xf32> to vector<16x128xf32>
    %182 = arith.mulf %181, %132 : vector<16x128xf32>
    %183 = vector.broadcast %39 : vector<1x1xf32> to vector<16x128xf32>
    %184 = arith.mulf %183, %135 : vector<16x128xf32>
    %185 = arith.addf %182, %184 : vector<16x128xf32>
    %186 = vector.broadcast %71 : vector<1x1xf32> to vector<16x128xf32>
    %187 = arith.mulf %186, %138 : vector<16x128xf32>
    %188 = arith.addf %185, %187 : vector<16x128xf32>
    %189 = vector.broadcast %103 : vector<1x1xf32> to vector<16x128xf32>
    %190 = arith.mulf %189, %141 : vector<16x128xf32>
    %191 = arith.addf %188, %190 : vector<16x128xf32>
    %cst_123 = arith.constant dense<0xFF800000> : vector<128xf32>
    %192 = vector.multi_reduction <maximumf>, %191, %cst_123 [0] : vector<16x128xf32> to vector<128xf32>
    %193 = vector.shape_cast %192 : vector<128xf32> to vector<1x128xf32>
    %194 = vector.broadcast %9 : vector<1x1xf32> to vector<16x128xf32>
    %195 = arith.mulf %194, %132 : vector<16x128xf32>
    %196 = vector.broadcast %41 : vector<1x1xf32> to vector<16x128xf32>
    %197 = arith.mulf %196, %135 : vector<16x128xf32>
    %198 = arith.addf %195, %197 : vector<16x128xf32>
    %199 = vector.broadcast %73 : vector<1x1xf32> to vector<16x128xf32>
    %200 = arith.mulf %199, %138 : vector<16x128xf32>
    %201 = arith.addf %198, %200 : vector<16x128xf32>
    %202 = vector.broadcast %105 : vector<1x1xf32> to vector<16x128xf32>
    %203 = arith.mulf %202, %141 : vector<16x128xf32>
    %204 = arith.addf %201, %203 : vector<16x128xf32>
    %cst_124 = arith.constant dense<0xFF800000> : vector<128xf32>
    %205 = vector.multi_reduction <maximumf>, %204, %cst_124 [0] : vector<16x128xf32> to vector<128xf32>
    %206 = vector.shape_cast %205 : vector<128xf32> to vector<1x128xf32>
    %207 = vector.broadcast %11 : vector<1x1xf32> to vector<16x128xf32>
    %208 = arith.mulf %207, %132 : vector<16x128xf32>
    %209 = vector.broadcast %43 : vector<1x1xf32> to vector<16x128xf32>
    %210 = arith.mulf %209, %135 : vector<16x128xf32>
    %211 = arith.addf %208, %210 : vector<16x128xf32>
    %212 = vector.broadcast %75 : vector<1x1xf32> to vector<16x128xf32>
    %213 = arith.mulf %212, %138 : vector<16x128xf32>
    %214 = arith.addf %211, %213 : vector<16x128xf32>
    %215 = vector.broadcast %107 : vector<1x1xf32> to vector<16x128xf32>
    %216 = arith.mulf %215, %141 : vector<16x128xf32>
    %217 = arith.addf %214, %216 : vector<16x128xf32>
    %cst_125 = arith.constant dense<0xFF800000> : vector<128xf32>
    %218 = vector.multi_reduction <maximumf>, %217, %cst_125 [0] : vector<16x128xf32> to vector<128xf32>
    %219 = vector.shape_cast %218 : vector<128xf32> to vector<1x128xf32>
    %220 = vector.broadcast %13 : vector<1x1xf32> to vector<16x128xf32>
    %221 = arith.mulf %220, %132 : vector<16x128xf32>
    %222 = vector.broadcast %45 : vector<1x1xf32> to vector<16x128xf32>
    %223 = arith.mulf %222, %135 : vector<16x128xf32>
    %224 = arith.addf %221, %223 : vector<16x128xf32>
    %225 = vector.broadcast %77 : vector<1x1xf32> to vector<16x128xf32>
    %226 = arith.mulf %225, %138 : vector<16x128xf32>
    %227 = arith.addf %224, %226 : vector<16x128xf32>
    %228 = vector.broadcast %109 : vector<1x1xf32> to vector<16x128xf32>
    %229 = arith.mulf %228, %141 : vector<16x128xf32>
    %230 = arith.addf %227, %229 : vector<16x128xf32>
    %cst_126 = arith.constant dense<0xFF800000> : vector<128xf32>
    %231 = vector.multi_reduction <maximumf>, %230, %cst_126 [0] : vector<16x128xf32> to vector<128xf32>
    %232 = vector.shape_cast %231 : vector<128xf32> to vector<1x128xf32>
    %233 = vector.broadcast %15 : vector<1x1xf32> to vector<16x128xf32>
    %234 = arith.mulf %233, %132 : vector<16x128xf32>
    %235 = vector.broadcast %47 : vector<1x1xf32> to vector<16x128xf32>
    %236 = arith.mulf %235, %135 : vector<16x128xf32>
    %237 = arith.addf %234, %236 : vector<16x128xf32>
    %238 = vector.broadcast %79 : vector<1x1xf32> to vector<16x128xf32>
    %239 = arith.mulf %238, %138 : vector<16x128xf32>
    %240 = arith.addf %237, %239 : vector<16x128xf32>
    %241 = vector.broadcast %111 : vector<1x1xf32> to vector<16x128xf32>
    %242 = arith.mulf %241, %141 : vector<16x128xf32>
    %243 = arith.addf %240, %242 : vector<16x128xf32>
    %cst_127 = arith.constant dense<0xFF800000> : vector<128xf32>
    %244 = vector.multi_reduction <maximumf>, %243, %cst_127 [0] : vector<16x128xf32> to vector<128xf32>
    %245 = vector.shape_cast %244 : vector<128xf32> to vector<1x128xf32>
    %246 = vector.broadcast %17 : vector<1x1xf32> to vector<16x128xf32>
    %247 = arith.mulf %246, %132 : vector<16x128xf32>
    %248 = vector.broadcast %49 : vector<1x1xf32> to vector<16x128xf32>
    %249 = arith.mulf %248, %135 : vector<16x128xf32>
    %250 = arith.addf %247, %249 : vector<16x128xf32>
    %251 = vector.broadcast %81 : vector<1x1xf32> to vector<16x128xf32>
    %252 = arith.mulf %251, %138 : vector<16x128xf32>
    %253 = arith.addf %250, %252 : vector<16x128xf32>
    %254 = vector.broadcast %113 : vector<1x1xf32> to vector<16x128xf32>
    %255 = arith.mulf %254, %141 : vector<16x128xf32>
    %256 = arith.addf %253, %255 : vector<16x128xf32>
    %cst_128 = arith.constant dense<0xFF800000> : vector<128xf32>
    %257 = vector.multi_reduction <maximumf>, %256, %cst_128 [0] : vector<16x128xf32> to vector<128xf32>
    %258 = vector.shape_cast %257 : vector<128xf32> to vector<1x128xf32>
    %259 = vector.broadcast %19 : vector<1x1xf32> to vector<16x128xf32>
    %260 = arith.mulf %259, %132 : vector<16x128xf32>
    %261 = vector.broadcast %51 : vector<1x1xf32> to vector<16x128xf32>
    %262 = arith.mulf %261, %135 : vector<16x128xf32>
    %263 = arith.addf %260, %262 : vector<16x128xf32>
    %264 = vector.broadcast %83 : vector<1x1xf32> to vector<16x128xf32>
    %265 = arith.mulf %264, %138 : vector<16x128xf32>
    %266 = arith.addf %263, %265 : vector<16x128xf32>
    %267 = vector.broadcast %115 : vector<1x1xf32> to vector<16x128xf32>
    %268 = arith.mulf %267, %141 : vector<16x128xf32>
    %269 = arith.addf %266, %268 : vector<16x128xf32>
    %cst_129 = arith.constant dense<0xFF800000> : vector<128xf32>
    %270 = vector.multi_reduction <maximumf>, %269, %cst_129 [0] : vector<16x128xf32> to vector<128xf32>
    %271 = vector.shape_cast %270 : vector<128xf32> to vector<1x128xf32>
    %272 = vector.broadcast %21 : vector<1x1xf32> to vector<16x128xf32>
    %273 = arith.mulf %272, %132 : vector<16x128xf32>
    %274 = vector.broadcast %53 : vector<1x1xf32> to vector<16x128xf32>
    %275 = arith.mulf %274, %135 : vector<16x128xf32>
    %276 = arith.addf %273, %275 : vector<16x128xf32>
    %277 = vector.broadcast %85 : vector<1x1xf32> to vector<16x128xf32>
    %278 = arith.mulf %277, %138 : vector<16x128xf32>
    %279 = arith.addf %276, %278 : vector<16x128xf32>
    %280 = vector.broadcast %117 : vector<1x1xf32> to vector<16x128xf32>
    %281 = arith.mulf %280, %141 : vector<16x128xf32>
    %282 = arith.addf %279, %281 : vector<16x128xf32>
    %cst_130 = arith.constant dense<0xFF800000> : vector<128xf32>
    %283 = vector.multi_reduction <maximumf>, %282, %cst_130 [0] : vector<16x128xf32> to vector<128xf32>
    %284 = vector.shape_cast %283 : vector<128xf32> to vector<1x128xf32>
    %285 = vector.broadcast %23 : vector<1x1xf32> to vector<16x128xf32>
    %286 = arith.mulf %285, %132 : vector<16x128xf32>
    %287 = vector.broadcast %55 : vector<1x1xf32> to vector<16x128xf32>
    %288 = arith.mulf %287, %135 : vector<16x128xf32>
    %289 = arith.addf %286, %288 : vector<16x128xf32>
    %290 = vector.broadcast %87 : vector<1x1xf32> to vector<16x128xf32>
    %291 = arith.mulf %290, %138 : vector<16x128xf32>
    %292 = arith.addf %289, %291 : vector<16x128xf32>
    %293 = vector.broadcast %119 : vector<1x1xf32> to vector<16x128xf32>
    %294 = arith.mulf %293, %141 : vector<16x128xf32>
    %295 = arith.addf %292, %294 : vector<16x128xf32>
    %cst_131 = arith.constant dense<0xFF800000> : vector<128xf32>
    %296 = vector.multi_reduction <maximumf>, %295, %cst_131 [0] : vector<16x128xf32> to vector<128xf32>
    %297 = vector.shape_cast %296 : vector<128xf32> to vector<1x128xf32>
    %298 = vector.broadcast %25 : vector<1x1xf32> to vector<16x128xf32>
    %299 = arith.mulf %298, %132 : vector<16x128xf32>
    %300 = vector.broadcast %57 : vector<1x1xf32> to vector<16x128xf32>
    %301 = arith.mulf %300, %135 : vector<16x128xf32>
    %302 = arith.addf %299, %301 : vector<16x128xf32>
    %303 = vector.broadcast %89 : vector<1x1xf32> to vector<16x128xf32>
    %304 = arith.mulf %303, %138 : vector<16x128xf32>
    %305 = arith.addf %302, %304 : vector<16x128xf32>
    %306 = vector.broadcast %121 : vector<1x1xf32> to vector<16x128xf32>
    %307 = arith.mulf %306, %141 : vector<16x128xf32>
    %308 = arith.addf %305, %307 : vector<16x128xf32>
    %cst_132 = arith.constant dense<0xFF800000> : vector<128xf32>
    %309 = vector.multi_reduction <maximumf>, %308, %cst_132 [0] : vector<16x128xf32> to vector<128xf32>
    %310 = vector.shape_cast %309 : vector<128xf32> to vector<1x128xf32>
    %311 = vector.broadcast %27 : vector<1x1xf32> to vector<16x128xf32>
    %312 = arith.mulf %311, %132 : vector<16x128xf32>
    %313 = vector.broadcast %59 : vector<1x1xf32> to vector<16x128xf32>
    %314 = arith.mulf %313, %135 : vector<16x128xf32>
    %315 = arith.addf %312, %314 : vector<16x128xf32>
    %316 = vector.broadcast %91 : vector<1x1xf32> to vector<16x128xf32>
    %317 = arith.mulf %316, %138 : vector<16x128xf32>
    %318 = arith.addf %315, %317 : vector<16x128xf32>
    %319 = vector.broadcast %123 : vector<1x1xf32> to vector<16x128xf32>
    %320 = arith.mulf %319, %141 : vector<16x128xf32>
    %321 = arith.addf %318, %320 : vector<16x128xf32>
    %cst_133 = arith.constant dense<0xFF800000> : vector<128xf32>
    %322 = vector.multi_reduction <maximumf>, %321, %cst_133 [0] : vector<16x128xf32> to vector<128xf32>
    %323 = vector.shape_cast %322 : vector<128xf32> to vector<1x128xf32>
    %324 = vector.broadcast %29 : vector<1x1xf32> to vector<16x128xf32>
    %325 = arith.mulf %324, %132 : vector<16x128xf32>
    %326 = vector.broadcast %61 : vector<1x1xf32> to vector<16x128xf32>
    %327 = arith.mulf %326, %135 : vector<16x128xf32>
    %328 = arith.addf %325, %327 : vector<16x128xf32>
    %329 = vector.broadcast %93 : vector<1x1xf32> to vector<16x128xf32>
    %330 = arith.mulf %329, %138 : vector<16x128xf32>
    %331 = arith.addf %328, %330 : vector<16x128xf32>
    %332 = vector.broadcast %125 : vector<1x1xf32> to vector<16x128xf32>
    %333 = arith.mulf %332, %141 : vector<16x128xf32>
    %334 = arith.addf %331, %333 : vector<16x128xf32>
    %cst_134 = arith.constant dense<0xFF800000> : vector<128xf32>
    %335 = vector.multi_reduction <maximumf>, %334, %cst_134 [0] : vector<16x128xf32> to vector<128xf32>
    %336 = vector.shape_cast %335 : vector<128xf32> to vector<1x128xf32>
    %337 = vector.broadcast %31 : vector<1x1xf32> to vector<16x128xf32>
    %338 = arith.mulf %337, %132 : vector<16x128xf32>
    %339 = vector.broadcast %63 : vector<1x1xf32> to vector<16x128xf32>
    %340 = arith.mulf %339, %135 : vector<16x128xf32>
    %341 = arith.addf %338, %340 : vector<16x128xf32>
    %342 = vector.broadcast %95 : vector<1x1xf32> to vector<16x128xf32>
    %343 = arith.mulf %342, %138 : vector<16x128xf32>
    %344 = arith.addf %341, %343 : vector<16x128xf32>
    %345 = vector.broadcast %127 : vector<1x1xf32> to vector<16x128xf32>
    %346 = arith.mulf %345, %141 : vector<16x128xf32>
    %347 = arith.addf %344, %346 : vector<16x128xf32>
    %cst_135 = arith.constant dense<0xFF800000> : vector<128xf32>
    %348 = vector.multi_reduction <maximumf>, %347, %cst_135 [0] : vector<16x128xf32> to vector<128xf32>
    %349 = vector.shape_cast %348 : vector<128xf32> to vector<1x128xf32>
    %350 = tpu.concatenate %154, %167, %180, %193, %206, %219, %232, %245, %258, %271, %284, %297, %310, %323, %336, %349 in 0 : vector<1x128xf32>, vector<1x128xf32>, vector<1x128xf32>, vector<1x128xf32>, vector<1x128xf32>, vector<1x128xf32>, vector<1x128xf32>, vector<1x128xf32>, vector<1x128xf32>, vector<1x128xf32>, vector<1x128xf32>, vector<1x128xf32>, vector<1x128xf32>, vector<1x128xf32>, vector<1x128xf32>, vector<1x128xf32> -> vector<16x128xf32>
    %351 = arith.maximumf %128, %350 : vector<16x128xf32>
    %c0_136 = arith.constant 0 : index
    %c0_137 = arith.constant 0 : index
    %352 = vector.load %arg3[%c0_136, %c0_137] : memref<16x1xf32, #tpu.memory_space<vmem>>, vector<16x1xf32>
    %353 = vector.broadcast %352 : vector<16x1xf32> to vector<16x128xf32>
    %354 = arith.addf %351, %353 : vector<16x128xf32>
    %355 = arith.negf %354 : vector<16x128xf32>
    %356 = math.exp %355 : vector<16x128xf32>
    %cst_138 = arith.constant 1.000000e+00 : f32
    %357 = vector.broadcast %cst_138 : f32 to vector<16x128xf32>
    %358 = arith.addf %357, %356 : vector<16x128xf32>
    %359 = arith.divf %357, %358 : vector<16x128xf32>
    %c0_139 = arith.constant 0 : index
    %c0_140 = arith.constant 0 : index
    %360 = vector.load %arg4[%c0_139, %c0_140] : memref<192x16xbf16, #tpu.memory_space<vmem>>, vector<192x16xbf16>
    %361 = arith.truncf %359 : vector<16x128xf32> to vector<16x128xbf16>
    %cst_141 = arith.constant dense<0.000000e+00> : vector<192x128xf32>
    %362 = tpu.matmul %360, %361, %cst_141 {dimension_numbers = #tpu.dot_dimension_numbers<[1], [0], [0], [1], [0, 0, 1, 1], [], []>} : vector<192x16xbf16>, vector<16x128xbf16>, vector<192x128xf32> -> vector<192x128xf32>
    %c0_142 = arith.constant 0 : index
    %c0_143 = arith.constant 0 : index
    %363 = vector.load %arg5[%c0_142, %c0_143] : memref<192x1xf32, #tpu.memory_space<vmem>>, vector<192x1xf32>
    %364 = vector.broadcast %363 : vector<192x1xf32> to vector<192x128xf32>
    %365 = arith.addf %362, %364 : vector<192x128xf32>
    %366 = vector.extract_strided_slice %365 {offsets = [0, 0], sizes = [64, 128], strides = [1, 1]} : vector<192x128xf32> to vector<64x128xf32>
    %367 = arith.negf %366 : vector<64x128xf32>
    %368 = math.exp %367 : vector<64x128xf32>
    %cst_144 = arith.constant 1.000000e+00 : f32
    %369 = vector.broadcast %cst_144 : f32 to vector<64x128xf32>
    %370 = arith.addf %369, %368 : vector<64x128xf32>
    %371 = arith.divf %369, %370 : vector<64x128xf32>
    %372 = vector.extract_strided_slice %365 {offsets = [64, 0], sizes = [64, 128], strides = [1, 1]} : vector<192x128xf32> to vector<64x128xf32>
    %373 = math.tanh %372 : vector<64x128xf32>
    %374 = vector.extract_strided_slice %365 {offsets = [128, 0], sizes = [64, 128], strides = [1, 1]} : vector<192x128xf32> to vector<64x128xf32>
    %375 = arith.negf %374 : vector<64x128xf32>
    %376 = math.exp %375 : vector<64x128xf32>
    %cst_145 = arith.constant 1.000000e+00 : f32
    %377 = vector.broadcast %cst_145 : f32 to vector<64x128xf32>
    %378 = arith.addf %377, %376 : vector<64x128xf32>
    %379 = arith.divf %377, %378 : vector<64x128xf32>
    %380 = arith.mulf %371, %373 : vector<64x128xf32>
    %381 = math.tanh %380 : vector<64x128xf32>
    %382 = arith.mulf %379, %381 : vector<64x128xf32>
    %383 = math.tanh %382 : vector<64x128xf32>
    %c0_146 = arith.constant 0 : index
    %c0_147 = arith.constant 0 : index
    %384 = vector.load %arg6[%c0_146, %c0_147] : memref<1x64xbf16, #tpu.memory_space<vmem>>, vector<1x64xbf16>
    %385 = arith.truncf %383 : vector<64x128xf32> to vector<64x128xbf16>
    %cst_148 = arith.constant dense<0.000000e+00> : vector<1x128xf32>
    %386 = tpu.matmul %384, %385, %cst_148 {dimension_numbers = #tpu.dot_dimension_numbers<[1], [0], [0], [1], [0, 0, 1, 1], [], []>} : vector<1x64xbf16>, vector<64x128xbf16>, vector<1x128xf32> -> vector<1x128xf32>
    %c0_149 = arith.constant 0 : index
    %387 = memref.load %arg7[%c0_149] : memref<1xf32, #tpu.memory_space<smem>>
    %388 = vector.broadcast %387 : f32 to vector<1x128xf32>
    %389 = arith.addf %386, %388 : vector<1x128xf32>
    %390 = math.tanh %389 : vector<1x128xf32>
    %c0_150 = arith.constant 0 : index
    %c0_151 = arith.constant 0 : index
    %c0_152 = arith.constant 0 : index
    %391 = vector.load %arg8[%c0_150, %c0_151, %c0_152] : memref<1x1x128xf32, #tpu.memory_space<vmem>>, vector<1x1x128xf32>
    %392 = vector.shape_cast %391 : vector<1x1x128xf32> to vector<1x128xf32>
    %393 = vector.shape_cast %390 : vector<1x128xf32> to vector<1x1x128xf32>
    tpu.vector_store %arg8[%c0_150, %c0_151, %c0_152], %393 {strides = array<i32>} : memref<1x1x128xf32, #tpu.memory_space<vmem>>, vector<1x1x128xf32>,
    return
  }
  func.func @transform_0(%arg0: i32) -> (i32, i32, i32) {
    %c0_i32 = arith.constant 0 : i32
    %c0_i32_0 = arith.constant 0 : i32
    %c0_i32_1 = arith.constant 0 : i32
    return %c0_i32, %c0_i32_0, %arg0 : i32, i32, i32
  }
  func.func @transform_1(%arg0: i32) -> (i32, i32) {
    %c0_i32 = arith.constant 0 : i32
    %c0_i32_0 = arith.constant 0 : i32
    %c0_i32_1 = arith.constant 0 : i32
    return %c0_i32, %c0_i32_0 : i32, i32
  }
  func.func @transform_2(%arg0: i32) -> (i32, i32) {
    %c0_i32 = arith.constant 0 : i32
    %c0_i32_0 = arith.constant 0 : i32
    %c0_i32_1 = arith.constant 0 : i32
    return %c0_i32, %c0_i32_0 : i32, i32
  }
  func.func @transform_3(%arg0: i32) -> (i32, i32) {
    %c0_i32 = arith.constant 0 : i32
    %c0_i32_0 = arith.constant 0 : i32
    %c0_i32_1 = arith.constant 0 : i32
    return %c0_i32, %c0_i32_0 : i32, i32
  }
  func.func @transform_4(%arg0: i32) -> (i32, i32) {
    %c0_i32 = arith.constant 0 : i32
    %c0_i32_0 = arith.constant 0 : i32
    %c0_i32_1 = arith.constant 0 : i32
    return %c0_i32, %c0_i32_0 : i32, i32
  }
  func.func @transform_5(%arg0: i32) -> (i32, i32) {
    %c0_i32 = arith.constant 0 : i32
    %c0_i32_0 = arith.constant 0 : i32
    %c0_i32_1 = arith.constant 0 : i32
    return %c0_i32, %c0_i32_0 : i32, i32
  }
  func.func @transform_6(%arg0: i32) -> i32 {
    %c0_i32 = arith.constant 0 : i32
    %c0_i32_0 = arith.constant 0 : i32
    return %c0_i32 : i32
  }
  func.func @transform_7(%arg0: i32) -> (i32, i32, i32) {
    %c0_i32 = arith.constant 0 : i32
    %c0_i32_0 = arith.constant 0 : i32
    %c0_i32_1 = arith.constant 0 : i32
    return %arg0, %c0_i32, %c0_i32_0 : i32, i32, i32
  }
}

</mosaic_0001>

<llo_original>
// kernel: tpu_custom_call.1
$region0: #{tpu_custom_call.1}
  #allocation0 [shape = 'u32[]', space=smem, size = 0x4, offset = 0x4, fixed_abs, tag = 'smem constant byte address 0x4 - core index']
  #allocation1 [shape = 'u32[144,128]{1,0:T(1,128)}', space=vmem, size = 0x12000, scoped, tag = 'internal scratch']
  #allocation2 [shape = 'f32[1]{0:T(128)S(6)}', space=smem, size = 0x200, scoped, tag = 'scoped memory for tpu_custom_call.1']
  %s0 = inlined_call_operand.vmem [shape: f32[4,16,128], index: 0, kind: input, shape index: {}]
  %s1 = inlined_call_operand.vmem [shape: f32[4,16], index: 1, kind: input, shape index: {}]
  %s2 = inlined_call_operand.vmem [shape: f32[16,1], index: 2, kind: input, shape index: {}]
  %s3 = inlined_call_operand.vmem [shape: bf16[192,16], index: 3, kind: input, shape index: {}]
  %s4 = inlined_call_operand.vmem [shape: f32[192,1], index: 4, kind: input, shape index: {}]
  %s5 = inlined_call_operand.vmem [shape: bf16[1,64], index: 5, kind: input, shape index: {}]
  %s6 = inlined_call_operand.<no memory space> [shape: f32[1], index: 6, kind: input, shape index: {}]
  %s7 = inlined_call_operand.hbm [shape: f32[1,1,128], index: 7, kind: output, shape index: {}]
  %s8 = sld [smem:[#allocation0]]
  $region42: #{tpu_custom_call.1} parent=0
    _
  %s10 = ssub.s32 1, %s8
  %s11 = scalar_select 0, %s10, %s8
  %12 = sst [smem:[#allocation2]] %s6
  $region1: #{tpu_custom_call.1} parent=0
    #allocation3 [shape = 'u8[2048]{0}', space=smem, size = 0x800, scoped, tag = 'input window, operand 1, single buffered']
    #allocation4 [shape = 's32[1]{0}', space=sflag, size = 0x4, scoped, tag = 'scoped memory for tpu_custom_call.1']
    #allocation5 [shape = 's32[1]{0}', space=sflag, size = 0x4, scoped, tag = 'scoped memory for tpu_custom_call.1']
    #allocation6 [shape = 'u8[512]{0}', space=vmem, size = 0x400, scoped, tag = 'output window, operand 0, single buffered']
    %13 = vsyncpa [#allocation5], 0
    %14 = vsyncpa [#allocation4], 0
    // Predicated region
    $region2: #{tpu_custom_call.1} parent=1 // pred_check
      _
    $region3: #{tpu_custom_call.1} parent=1 // pred_check_branch
      %16 = sbr.rel (0) target = $region5
    $region4: #{tpu_custom_call.1} parent=1 // pred_region
      _
    $region5: #{tpu_custom_call.1} parent=1 // pred_fallthru
      _
    // Predicated region
    $region6: #{tpu_custom_call.1} parent=1 // pred_check
      _
    $region7: #{tpu_custom_call.1} parent=1 // pred_check_branch
      %18 = sbr.rel (0) target = $region9
    $region8: #{tpu_custom_call.1} parent=1 // pred_region
      %s20 = ssub.s32 64, 64
      %21 = vsyncadd [#allocation5], %s20
      %s23 = sshll.u32 %s1, 4
      %s24 = int_to_ptr.vmem [resolvable:$true] %s23
      %26 = dma.vmem_to_smem %s24, 64, [#allocation3], [#allocation5]
    $region9: #{tpu_custom_call.1} parent=1 // pred_fallthru
      _
    // Predicated region
    $region10: #{tpu_custom_call.1} parent=1 // pred_check
      _
    $region11: #{tpu_custom_call.1} parent=1 // pred_check_branch
      %28 = sbr.rel (0) target = $region13
    $region12: #{tpu_custom_call.1} parent=1 // pred_region
      _
    $region13: #{tpu_custom_call.1} parent=1 // pred_fallthru
      _
    // Predicated region
    $region14: #{tpu_custom_call.1} parent=1 // pred_check
      _
    $region15: #{tpu_custom_call.1} parent=1 // pred_check_branch
      %30 = sbr.rel (0) target = $region17
    $region16: #{tpu_custom_call.1} parent=1 // pred_region
      _
    $region17: #{tpu_custom_call.1} parent=1 // pred_fallthru
      _
    // Predicated region
    $region18: #{tpu_custom_call.1} parent=1 // pred_check
      _
    $region19: #{tpu_custom_call.1} parent=1 // pred_check_branch
      %32 = sbr.rel (0) target = $region21
    $region20: #{tpu_custom_call.1} parent=1 // pred_region
      _
    $region21: #{tpu_custom_call.1} parent=1 // pred_fallthru
      _
    // Predicated region
    $region22: #{tpu_custom_call.1} parent=1 // pred_check
      _
    $region23: #{tpu_custom_call.1} parent=1 // pred_check_branch
      %34 = sbr.rel (0) target = $region25
    $region24: #{tpu_custom_call.1} parent=1 // pred_region
      _
    $region25: #{tpu_custom_call.1} parent=1 // pred_fallthru
      _
    // Predicated region
    $region26: #{tpu_custom_call.1} parent=1 // pred_check
      _
    $region27: #{tpu_custom_call.1} parent=1 // pred_check_branch
      %36 = sbr.rel (0) target = $region29
    $region28: #{tpu_custom_call.1} parent=1 // pred_region
      _
    $region29: #{tpu_custom_call.1} parent=1 // pred_fallthru
      _
    // Predicated region
    $region30: #{tpu_custom_call.1} parent=1 // pred_check
      _
    $region31: #{tpu_custom_call.1} parent=1 // pred_check_branch
      %38 = sbr.rel (0) target = $region33
    $region32: #{tpu_custom_call.1} parent=1 // pred_region
      %39 = dma.done [#allocation5], 64
    $region33: #{tpu_custom_call.1} parent=1 // pred_fallthru
      _
    %40 = sfence
    %s42 = sld [smem:[#allocation3]]
    %s43 = sld [smem:[#allocation3 + $0x1]]
    %s44 = sld [smem:[#allocation3 + $0x2]]
    %s45 = sld [smem:[#allocation3 + $0x3]]
    %s46 = sld [smem:[#allocation3 + $0x4]]
    %s47 = sld [smem:[#allocation3 + $0x5]]
    %s48 = sld [smem:[#allocation3 + $0x6]]
    %s49 = sld [smem:[#allocation3 + $0x7]]
    %s50 = sld [smem:[#allocation3 + $0x8]]
    %s51 = sld [smem:[#allocation3 + $0x9]]
    %s52 = sld [smem:[#allocation3 + $0xa]]
    %s53 = sld [smem:[#allocation3 + $0xb]]
    %s54 = sld [smem:[#allocation3 + $0xc]]
    %s55 = sld [smem:[#allocation3 + $0xd]]
    %s56 = sld [smem:[#allocation3 + $0xe]]
    %s57 = sld [smem:[#allocation3 + $0xf]]
    %s58 = sld [smem:[#allocation3 + $0x80]]
    %s59 = sld [smem:[#allocation3 + $0x81]]
    %s60 = sld [smem:[#allocation3 + $0x82]]
    %s61 = sld [smem:[#allocation3 + $0x83]]
    %s62 = sld [smem:[#allocation3 + $0x84]]
    %s63 = sld [smem:[#allocation3 + $0x85]]
    %s64 = sld [smem:[#allocation3 + $0x86]]
    %s65 = sld [smem:[#allocation3 + $0x87]]
    %s66 = sld [smem:[#allocation3 + $0x88]]
    %s67 = sld [smem:[#allocation3 + $0x89]]
    %s68 = sld [smem:[#allocation3 + $0x8a]]
    %s69 = sld [smem:[#allocation3 + $0x8b]]
    %s70 = sld [smem:[#allocation3 + $0x8c]]
    %s71 = sld [smem:[#allocation3 + $0x8d]]
    %s72 = sld [smem:[#allocation3 + $0x8e]]
    %s73 = sld [smem:[#allocation3 + $0x8f]]
    %s74 = sld [smem:[#allocation3 + $0x100]]
    %s75 = sld [smem:[#allocation3 + $0x101]]
    %s76 = sld [smem:[#allocation3 + $0x102]]
    %s77 = sld [smem:[#allocation3 + $0x103]]
    %s78 = sld [smem:[#allocation3 + $0x104]]
    %s79 = sld [smem:[#allocation3 + $0x105]]
    %s80 = sld [smem:[#allocation3 + $0x106]]
    %s81 = sld [smem:[#allocation3 + $0x107]]
    %s82 = sld [smem:[#allocation3 + $0x108]]
    %s83 = sld [smem:[#allocation3 + $0x109]]
    %s84 = sld [smem:[#allocation3 + $0x10a]]
    %s85 = sld [smem:[#allocation3 + $0x10b]]
    %s86 = sld [smem:[#allocation3 + $0x10c]]
    %s87 = sld [smem:[#allocation3 + $0x10d]]
    %s88 = sld [smem:[#allocation3 + $0x10e]]
    %s89 = sld [smem:[#allocation3 + $0x10f]]
    %s90 = sld [smem:[#allocation3 + $0x180]]
    %s91 = sld [smem:[#allocation3 + $0x181]]
    %s92 = sld [smem:[#allocation3 + $0x182]]
    %s93 = sld [smem:[#allocation3 + $0x183]]
    %s94 = sld [smem:[#allocation3 + $0x184]]
    %s95 = sld [smem:[#allocation3 + $0x185]]
    %s96 = sld [smem:[#allocation3 + $0x186]]
    %s97 = sld [smem:[#allocation3 + $0x187]]
    %s98 = sld [smem:[#allocation3 + $0x188]]
    %s99 = sld [smem:[#allocation3 + $0x189]]
    %s100 = sld [smem:[#allocation3 + $0x18a]]
    %s101 = sld [smem:[#allocation3 + $0x18b]]
    %s102 = sld [smem:[#allocation3 + $0x18c]]
    %s103 = sld [smem:[#allocation3 + $0x18d]]
    %s104 = sld [smem:[#allocation3 + $0x18e]]
    %s105 = sld [smem:[#allocation3 + $0x18f]]
    %v106 = vld [vmem:[%s0] sm:$0xff]
    %v107 = vld [vmem:[%s0 + $0x8] sm:$0xff]
    %s108 = sadd.s32 0, 16
    %s109 = scalar_lea.vmem %s0, %s108
    %v110 = vld [vmem:[%s109] sm:$0xff]
    %v111 = vld [vmem:[%s109 + $0x8] sm:$0xff]
    %s112 = sadd.s32 0, 32
    %s113 = scalar_lea.vmem %s0, %s112
    %v114 = vld [vmem:[%s113] sm:$0xff]
    %v115 = vld [vmem:[%s113 + $0x8] sm:$0xff]
    %s116 = sadd.s32 0, 48
    %s117 = scalar_lea.vmem %s0, %s116
    %v118 = vld [vmem:[%s117] sm:$0xff]
    %v119 = vld [vmem:[%s117 + $0x8] sm:$0xff]
    %v120 = vstv %s42
    %v121 = vmul.f32 %v120, %v106
    %v122 = vmul.f32 %v120, %v107
    %v123 = vstv %s58
    %v124 = vmul.f32 %v123, %v110
    %v125 = vmul.f32 %v123, %v111
    %v126 = vadd.f32 %v121, %v124
    %v127 = vadd.f32 %v122, %v125
    %v128 = vstv %s74
    %v129 = vmul.f32 %v128, %v114
    %v130 = vmul.f32 %v128, %v115
    %v131 = vadd.f32 %v126, %v129
    %v132 = vadd.f32 %v127, %v130
    %v133 = vstv %s90
    %v134 = vmul.f32 %v133, %v118
    %v135 = vmul.f32 %v133, %v119
    %v136 = vadd.f32 %v131, %v134
    %v137 = vadd.f32 %v132, %v135
    %v138 = vmax.f32 %v136, %v137
    %v139 = vrot.slane %v138, 4
    %v140 = vmax.f32 %v138, %v139
    %v141 = vrot.slane %v140, 2
    %v142 = vmax.f32 %v140, %v141
    %v143 = vrot.slane %v142, 1
    %v144 = vmax.f32 %v142, %v143
    %v145 = vstv %s43
    %v146 = vmul.f32 %v145, %v106
    %v147 = vmul.f32 %v145, %v107
    %v148 = vstv %s59
    %v149 = vmul.f32 %v148, %v110
    %v150 = vmul.f32 %v148, %v111
    %v151 = vadd.f32 %v146, %v149
    %v152 = vadd.f32 %v147, %v150
    %v153 = vstv %s75
    %v154 = vmul.f32 %v153, %v114
    %v155 = vmul.f32 %v153, %v115
    %v156 = vadd.f32 %v151, %v154
    %v157 = vadd.f32 %v152, %v155
    %v158 = vstv %s91
    %v159 = vmul.f32 %v158, %v118
    %v160 = vmul.f32 %v158, %v119
    %v161 = vadd.f32 %v156, %v159
    %v162 = vadd.f32 %v157, %v160
    %v163 = vmax.f32 %v161, %v162
    %v164 = vrot.slane %v163, 4
    %v165 = vmax.f32 %v163, %v164
    %v166 = vrot.slane %v165, 2
    %v167 = vmax.f32 %v165, %v166
    %v168 = vrot.slane %v167, 1
    %v169 = vmax.f32 %v167, %v168
    %v170 = vstv %s44
    %v171 = vmul.f32 %v170, %v106
    %v172 = vmul.f32 %v170, %v107
    %v173 = vstv %s60
    %v174 = vmul.f32 %v173, %v110
    %v175 = vmul.f32 %v173, %v111
    %v176 = vadd.f32 %v171, %v174
    %v177 = vadd.f32 %v172, %v175
    %v178 = vstv %s76
    %v179 = vmul.f32 %v178, %v114
    %v180 = vmul.f32 %v178, %v115
    %v181 = vadd.f32 %v176, %v179
    %v182 = vadd.f32 %v177, %v180
    %v183 = vstv %s92
    %v184 = vmul.f32 %v183, %v118
    %v185 = vmul.f32 %v183, %v119
    %v186 = vadd.f32 %v181, %v184
    %v187 = vadd.f32 %v182, %v185
    %v188 = vmax.f32 %v186, %v187
    %v189 = vrot.slane %v188, 4
    %v190 = vmax.f32 %v188, %v189
    %v191 = vrot.slane %v190, 2
    %v192 = vmax.f32 %v190, %v191
    %v193 = vrot.slane %v192, 1
    %v194 = vmax.f32 %v192, %v193
    %v195 = vstv %s45
    %v196 = vmul.f32 %v195, %v106
    %v197 = vmul.f32 %v195, %v107
    %v198 = vstv %s61
    %v199 = vmul.f32 %v198, %v110
    %v200 = vmul.f32 %v198, %v111
    %v201 = vadd.f32 %v196, %v199
    %v202 = vadd.f32 %v197, %v200
    %v203 = vstv %s77
    %v204 = vmul.f32 %v203, %v114
    %v205 = vmul.f32 %v203, %v115
    %v206 = vadd.f32 %v201, %v204
    %v207 = vadd.f32 %v202, %v205
    %v208 = vstv %s93
    %v209 = vmul.f32 %v208, %v118
    %v210 = vmul.f32 %v208, %v119
    %v211 = vadd.f32 %v206, %v209
    %v212 = vadd.f32 %v207, %v210
    %v213 = vmax.f32 %v211, %v212
    %v214 = vrot.slane %v213, 4
    %v215 = vmax.f32 %v213, %v214
    %v216 = vrot.slane %v215, 2
    %v217 = vmax.f32 %v215, %v216
    %v218 = vrot.slane %v217, 1
    %v219 = vmax.f32 %v217, %v218
    %v220 = vstv %s46
    %v221 = vmul.f32 %v220, %v106
    %v222 = vmul.f32 %v220, %v107
    %v223 = vstv %s62
    %v224 = vmul.f32 %v223, %v110
    %v225 = vmul.f32 %v223, %v111
    %v226 = vadd.f32 %v221, %v224
    %v227 = vadd.f32 %v222, %v225
    %v228 = vstv %s78
    %v229 = vmul.f32 %v228, %v114
    %v230 = vmul.f32 %v228, %v115
    %v231 = vadd.f32 %v226, %v229
    %v232 = vadd.f32 %v227, %v230
    %v233 = vstv %s94
    %v234 = vmul.f32 %v233, %v118
    %v235 = vmul.f32 %v233, %v119
    %v236 = vadd.f32 %v231, %v234
    %v237 = vadd.f32 %v232, %v235
    %v238 = vmax.f32 %v236, %v237
    %v239 = vrot.slane %v238, 4
    %v240 = vmax.f32 %v238, %v239
    %v241 = vrot.slane %v240, 2
    %v242 = vmax.f32 %v240, %v241
    %v243 = vrot.slane %v242, 1
    %v244 = vmax.f32 %v242, %v243
    %v245 = vstv %s47
    %v246 = vmul.f32 %v245, %v106
    %v247 = vmul.f32 %v245, %v107
    %v248 = vstv %s63
    %v249 = vmul.f32 %v248, %v110
    %v250 = vmul.f32 %v248, %v111
    %v251 = vadd.f32 %v246, %v249
    %v252 = vadd.f32 %v247, %v250
    %v253 = vstv %s79
    %v254 = vmul.f32 %v253, %v114
    %v255 = vmul.f32 %v253, %v115
    %v256 = vadd.f32 %v251, %v254
    %v257 = vadd.f32 %v252, %v255
    %v258 = vstv %s95
    %v259 = vmul.f32 %v258, %v118
    %v260 = vmul.f32 %v258, %v119
    %v261 = vadd.f32 %v256, %v259
    %v262 = vadd.f32 %v257, %v260
    %v263 = vmax.f32 %v261, %v262
    %v264 = vrot.slane %v263, 4
    %v265 = vmax.f32 %v263, %v264
    %v266 = vrot.slane %v265, 2
    %v267 = vmax.f32 %v265, %v266
    %v268 = vrot.slane %v267, 1
    %v269 = vmax.f32 %v267, %v268
    %v270 = vstv %s48
    %v271 = vmul.f32 %v270, %v106
    %v272 = vmul.f32 %v270, %v107
    %v273 = vstv %s64
    %v274 = vmul.f32 %v273, %v110
    %v275 = vmul.f32 %v273, %v111
    %v276 = vadd.f32 %v271, %v274
    %v277 = vadd.f32 %v272, %v275
    %v278 = vstv %s80
    %v279 = vmul.f32 %v278, %v114
    %v280 = vmul.f32 %v278, %v115
    %v281 = vadd.f32 %v276, %v279
    %v282 = vadd.f32 %v277, %v280
    %v283 = vstv %s96
    %v284 = vmul.f32 %v283, %v118
    %v285 = vmul.f32 %v283, %v119
    %v286 = vadd.f32 %v281, %v284
    %v287 = vadd.f32 %v282, %v285
    %v288 = vmax.f32 %v286, %v287
    %v289 = vrot.slane %v288, 4
    %v290 = vmax.f32 %v288, %v289
    %v291 = vrot.slane %v290, 2
    %v292 = vmax.f32 %v290, %v291
    %v293 = vrot.slane %v292, 1
    %v294 = vmax.f32 %v292, %v293
    %v295 = vstv %s49
    %v296 = vmul.f32 %v295, %v106
    %v297 = vmul.f32 %v295, %v107
    %v298 = vstv %s65
    %v299 = vmul.f32 %v298, %v110
    %v300 = vmul.f32 %v298, %v111
    %v301 = vadd.f32 %v296, %v299
    %v302 = vadd.f32 %v297, %v300
    %v303 = vstv %s81
    %v304 = vmul.f32 %v303, %v114
    %v305 = vmul.f32 %v303, %v115
    %v306 = vadd.f32 %v301, %v304
    %v307 = vadd.f32 %v302, %v305
    %v308 = vstv %s97
    %v309 = vmul.f32 %v308, %v118
    %v310 = vmul.f32 %v308, %v119
    %v311 = vadd.f32 %v306, %v309
    %v312 = vadd.f32 %v307, %v310
    %v313 = vmax.f32 %v311, %v312
    %v314 = vrot.slane %v313, 4
    %v315 = vmax.f32 %v313, %v314
    %v316 = vrot.slane %v315, 2
    %v317 = vmax.f32 %v315, %v316
    %v318 = vrot.slane %v317, 1
    %v319 = vmax.f32 %v317, %v318
    %v320 = vstv %s50
    %v321 = vmul.f32 %v320, %v106
    %v322 = vmul.f32 %v320, %v107
    %v323 = vstv %s66
    %v324 = vmul.f32 %v323, %v110
    %v325 = vmul.f32 %v323, %v111
    %v326 = vadd.f32 %v321, %v324
    %v327 = vadd.f32 %v322, %v325
    %v328 = vstv %s82
    %v329 = vmul.f32 %v328, %v114
    %v330 = vmul.f32 %v328, %v115
    %v331 = vadd.f32 %v326, %v329
    %v332 = vadd.f32 %v327, %v330
    %v333 = vstv %s98
    %v334 = vmul.f32 %v333, %v118
    %v335 = vmul.f32 %v333, %v119
    %v336 = vadd.f32 %v331, %v334
    %v337 = vadd.f32 %v332, %v335
    %v338 = vmax.f32 %v336, %v337
    %v339 = vrot.slane %v338, 4
    %v340 = vmax.f32 %v338, %v339
    %v341 = vrot.slane %v340, 2
    %v342 = vmax.f32 %v340, %v341
    %v343 = vrot.slane %v342, 1
    %v344 = vmax.f32 %v342, %v343
    %v345 = vstv %s51
    %v346 = vmul.f32 %v345, %v106
    %v347 = vmul.f32 %v345, %v107
    %v348 = vstv %s67
    %v349 = vmul.f32 %v348, %v110
    %v350 = vmul.f32 %v348, %v111
    %v351 = vadd.f32 %v346, %v349
    %v352 = vadd.f32 %v347, %v350
    %v353 = vstv %s83
    %v354 = vmul.f32 %v353, %v114
    %v355 = vmul.f32 %v353, %v115
    %v356 = vadd.f32 %v351, %v354
    %v357 = vadd.f32 %v352, %v355
    %v358 = vstv %s99
    %v359 = vmul.f32 %v358, %v118
    %v360 = vmul.f32 %v358, %v119
    %v361 = vadd.f32 %v356, %v359
    %v362 = vadd.f32 %v357, %v360
    %v363 = vmax.f32 %v361, %v362
    %v364 = vrot.slane %v363, 4
    %v365 = vmax.f32 %v363, %v364
    %v366 = vrot.slane %v365, 2
    %v367 = vmax.f32 %v365, %v366
    %v368 = vrot.slane %v367, 1
    %v369 = vmax.f32 %v367, %v368
    %v370 = vstv %s52
    %v371 = vmul.f32 %v370, %v106
    %v372 = vmul.f32 %v370, %v107
    %v373 = vstv %s68
    %v374 = vmul.f32 %v373, %v110
    %v375 = vmul.f32 %v373, %v111
    %v376 = vadd.f32 %v371, %v374
    %v377 = vadd.f32 %v372, %v375
    %v378 = vstv %s84
    %v379 = vmul.f32 %v378, %v114
    %v380 = vmul.f32 %v378, %v115
    %v381 = vadd.f32 %v376, %v379
    %v382 = vadd.f32 %v377, %v380
    %v383 = vstv %s100
    %v384 = vmul.f32 %v383, %v118
    %v385 = vmul.f32 %v383, %v119
    %v386 = vadd.f32 %v381, %v384
    %v387 = vadd.f32 %v382, %v385
    %v388 = vmax.f32 %v386, %v387
    %v389 = vrot.slane %v388, 4
    %v390 = vmax.f32 %v388, %v389
    %v391 = vrot.slane %v390, 2
    %v392 = vmax.f32 %v390, %v391
    %v393 = vrot.slane %v392, 1
    %v394 = vmax.f32 %v392, %v393
    %v395 = vstv %s53
    %v396 = vmul.f32 %v395, %v106
    %v397 = vmul.f32 %v395, %v107
    %v398 = vstv %s69
    %v399 = vmul.f32 %v398, %v110
    %v400 = vmul.f32 %v398, %v111
    %v401 = vadd.f32 %v396, %v399
    %v402 = vadd.f32 %v397, %v400
    %v403 = vstv %s85
    %v404 = vmul.f32 %v403, %v114
    %v405 = vmul.f32 %v403, %v115
    %v406 = vadd.f32 %v401, %v404
    %v407 = vadd.f32 %v402, %v405
    %v408 = vstv %s101
    %v409 = vmul.f32 %v408, %v118
    %v410 = vmul.f32 %v408, %v119
    %v411 = vadd.f32 %v406, %v409
    %v412 = vadd.f32 %v407, %v410
    %v413 = vmax.f32 %v411, %v412
    %v414 = vrot.slane %v413, 4
    %v415 = vmax.f32 %v413, %v414
    %v416 = vrot.slane %v415, 2
    %v417 = vmax.f32 %v415, %v416
    %v418 = vrot.slane %v417, 1
    %v419 = vmax.f32 %v417, %v418
    %v420 = vstv %s54
    %v421 = vmul.f32 %v420, %v106
    %v422 = vmul.f32 %v420, %v107
    %v423 = vstv %s70
    %v424 = vmul.f32 %v423, %v110
    %v425 = vmul.f32 %v423, %v111
    %v426 = vadd.f32 %v421, %v424
    %v427 = vadd.f32 %v422, %v425
    %v428 = vstv %s86
    %v429 = vmul.f32 %v428, %v114
    %v430 = vmul.f32 %v428, %v115
    %v431 = vadd.f32 %v426, %v429
    %v432 = vadd.f32 %v427, %v430
    %v433 = vstv %s102
    %v434 = vmul.f32 %v433, %v118
    %v435 = vmul.f32 %v433, %v119
    %v436 = vadd.f32 %v431, %v434
    %v437 = vadd.f32 %v432, %v435
    %v438 = vmax.f32 %v436, %v437
    %v439 = vrot.slane %v438, 4
    %v440 = vmax.f32 %v438, %v439
    %v441 = vrot.slane %v440, 2
    %v442 = vmax.f32 %v440, %v441
    %v443 = vrot.slane %v442, 1
    %v444 = vmax.f32 %v442, %v443
    %v445 = vstv %s55
    %v446 = vmul.f32 %v445, %v106
    %v447 = vmul.f32 %v445, %v107
    %v448 = vstv %s71
    %v449 = vmul.f32 %v448, %v110
    %v450 = vmul.f32 %v448, %v111
    %v451 = vadd.f32 %v446, %v449
    %v452 = vadd.f32 %v447, %v450
    %v453 = vstv %s87
    %v454 = vmul.f32 %v453, %v114
    %v455 = vmul.f32 %v453, %v115
    %v456 = vadd.f32 %v451, %v454
    %v457 = vadd.f32 %v452, %v455
    %v458 = vstv %s103
    %v459 = vmul.f32 %v458, %v118
    %v460 = vmul.f32 %v458, %v119
    %v461 = vadd.f32 %v456, %v459
    %v462 = vadd.f32 %v457, %v460
    %v463 = vmax.f32 %v461, %v462
    %v464 = vrot.slane %v463, 4
    %v465 = vmax.f32 %v463, %v464
    %v466 = vrot.slane %v465, 2
    %v467 = vmax.f32 %v465, %v466
    %v468 = vrot.slane %v467, 1
    %v469 = vmax.f32 %v467, %v468
    %v470 = vstv %s56
    %v471 = vmul.f32 %v470, %v106
    %v472 = vmul.f32 %v470, %v107
    %v473 = vstv %s72
    %v474 = vmul.f32 %v473, %v110
    %v475 = vmul.f32 %v473, %v111
    %v476 = vadd.f32 %v471, %v474
    %v477 = vadd.f32 %v472, %v475
    %v478 = vstv %s88
    %v479 = vmul.f32 %v478, %v114
    %v480 = vmul.f32 %v478, %v115
    %v481 = vadd.f32 %v476, %v479
    %v482 = vadd.f32 %v477, %v480
    %v483 = vstv %s104
    %v484 = vmul.f32 %v483, %v118
    %v485 = vmul.f32 %v483, %v119
    %v486 = vadd.f32 %v481, %v484
    %v487 = vadd.f32 %v482, %v485
    %v488 = vmax.f32 %v486, %v487
    %v489 = vrot.slane %v488, 4
    %v490 = vmax.f32 %v488, %v489
    %v491 = vrot.slane %v490, 2
    %v492 = vmax.f32 %v490, %v491
    %v493 = vrot.slane %v492, 1
    %v494 = vmax.f32 %v492, %v493
    %v495 = vstv %s57
    %v496 = vmul.f32 %v495, %v106
    %v497 = vmul.f32 %v495, %v107
    %v498 = vstv %s73
    %v499 = vmul.f32 %v498, %v110
    %v500 = vmul.f32 %v498, %v111
    %v501 = vadd.f32 %v496, %v499
    %v502 = vadd.f32 %v497, %v500
    %v503 = vstv %s89
    %v504 = vmul.f32 %v503, %v114
    %v505 = vmul.f32 %v503, %v115
    %v506 = vadd.f32 %v501, %v504
    %v507 = vadd.f32 %v502, %v505
    %v508 = vstv %s105
    %v509 = vmul.f32 %v508, %v118
    %v510 = vmul.f32 %v508, %v119
    %v511 = vadd.f32 %v506, %v509
    %v512 = vadd.f32 %v507, %v510
    %v513 = vmax.f32 %v511, %v512
    %v514 = vrot.slane %v513, 4
    %v515 = vmax.f32 %v513, %v514
    %v516 = vrot.slane %v515, 2
    %v517 = vmax.f32 %v515, %v516
    %v518 = vrot.slane %v517, 1
    %v519 = vmax.f32 %v517, %v518
    %vm520 = vcmask 1040384
    %v521 = vsel %vm520, %v144, %v169
    %vm522 = vcmask 1041408
    %v523 = vsel %vm522, %v521, %v194
    %vm524 = vcmask 1042432
    %v525 = vsel %vm524, %v523, %v219
    %vm526 = vcmask 1043456
    %v527 = vsel %vm526, %v525, %v244
    %vm528 = vcmask 1044480
    %v529 = vsel %vm528, %v527, %v269
    %vm530 = vcmask 1045504
    %v531 = vsel %vm530, %v529, %v294
    %vm532 = vcmask 1046528
    %v533 = vsel %vm532, %v531, %v319
    %v534 = vsel %vm520, %v344, %v369
    %v535 = vsel %vm522, %v534, %v394
    %v536 = vsel %vm524, %v535, %v419
    %v537 = vsel %vm526, %v536, %v444
    %v538 = vsel %vm528, %v537, %v469
    %v539 = vsel %vm530, %v538, %v494
    %v540 = vsel %vm532, %v539, %v519
    %v541 = vld [vmem:[%s2] sm:$0xff]
    %v542 = vld [vmem:[%s2 + $0x8] sm:$0xff]
    %544 = vset.pattern.permute.xlu0 0
    %545 = vperm.xlu0 %544, %v541
    %v546 = vpop.permute.xlu0 %545
    %549 = vset.pattern.permute.xlu0 0
    %550 = vperm.xlu0 %549, %v542
    %v551 = vpop.permute.xlu0 %550
    %v553 = vadd.f32 %v533, %v546
    %v554 = vadd.f32 %v540, %v551
    %v555 = vxor.u32 %v553, 2147483648
    %v556 = vxor.u32 %v554, 2147483648
    %v557 = vmul.f32 %v555, 1.442695
    %v558 = vpow.pop %v557
    %v559 = vmul.f32 %v556, 1.442695
    %v560 = vpow.pop %v559
    %v561 = vadd.f32 %v558, 1.0
    %v562 = vadd.f32 %v560, 1.0
    %v563 = vrcp.pop %v561
    %v564 = vmul.f32 1.0, %v563
    %v565 = vrcp.pop %v562
    %v566 = vmul.f32 1.0, %v565
    %v567 = vld [vmem:[%s3] sm:$0xf]
    %v568 = vld [vmem:[%s3 + $0x4] sm:$0xf]
    %v569 = vld [vmem:[%s3 + $0x8] sm:$0xf]
    %v570 = vld [vmem:[%s3 + $0xc] sm:$0xf]
    %v571 = vld [vmem:[%s3 + $0x10] sm:$0xf]
    %v572 = vld [vmem:[%s3 + $0x14] sm:$0xf]
    %v573 = vld [vmem:[%s3 + $0x18] sm:$0xf]
    %v574 = vld [vmem:[%s3 + $0x1c] sm:$0xf]
    %v575 = vld [vmem:[%s3 + $0x20] sm:$0xf]
    %v576 = vld [vmem:[%s3 + $0x24] sm:$0xf]
    %v577 = vld [vmem:[%s3 + $0x28] sm:$0xf]
    %v578 = vld [vmem:[%s3 + $0x2c] sm:$0xf]
    %v579 = vld [vmem:[%s3 + $0x30] sm:$0xf]
    %v580 = vld [vmem:[%s3 + $0x34] sm:$0xf]
    %v581 = vld [vmem:[%s3 + $0x38] sm:$0xf]
    %v582 = vld [vmem:[%s3 + $0x3c] sm:$0xf]
    %v583 = vld [vmem:[%s3 + $0x40] sm:$0xf]
    %v584 = vld [vmem:[%s3 + $0x44] sm:$0xf]
    %v585 = vld [vmem:[%s3 + $0x48] sm:$0xf]
    %v586 = vld [vmem:[%s3 + $0x4c] sm:$0xf]
    %v587 = vld [vmem:[%s3 + $0x50] sm:$0xf]
    %v588 = vld [vmem:[%s3 + $0x54] sm:$0xf]
    %v589 = vld [vmem:[%s3 + $0x58] sm:$0xf]
    %v590 = vld [vmem:[%s3 + $0x5c] sm:$0xf]
    %v591 = vpack.c.bf16 %v566, %v564
    %v592 = vld [vmem:[%s4] sm:$0xff]
    %v593 = vld [vmem:[%s4 + $0x8] sm:$0xff]
    %v594 = vld [vmem:[%s4 + $0x10] sm:$0xff]
    %v595 = vld [vmem:[%s4 + $0x18] sm:$0xff]
    %v596 = vld [vmem:[%s4 + $0x20] sm:$0xff]
    %v597 = vld [vmem:[%s4 + $0x28] sm:$0xff]
    %v598 = vld [vmem:[%s4 + $0x30] sm:$0xff]
    %v599 = vld [vmem:[%s4 + $0x38] sm:$0xff]
    %v600 = vld [vmem:[%s4 + $0x40] sm:$0xff]
    %v601 = vld [vmem:[%s4 + $0x48] sm:$0xff]
    %v602 = vld [vmem:[%s4 + $0x50] sm:$0xff]
    %v603 = vld [vmem:[%s4 + $0x58] sm:$0xff]
    %v604 = vld [vmem:[%s4 + $0x60] sm:$0xff]
    %v605 = vld [vmem:[%s4 + $0x68] sm:$0xff]
    %v606 = vld [vmem:[%s4 + $0x70] sm:$0xff]
    %v607 = vld [vmem:[%s4 + $0x78] sm:$0xff]
    %v608 = vld [vmem:[%s4 + $0x80] sm:$0xff]
    %v609 = vld [vmem:[%s4 + $0x88] sm:$0xff]
    %v610 = vld [vmem:[%s4 + $0x90] sm:$0xff]
    %v611 = vld [vmem:[%s4 + $0x98] sm:$0xff]
    %v612 = vld [vmem:[%s4 + $0xa0] sm:$0xff]
    %v613 = vld [vmem:[%s4 + $0xa8] sm:$0xff]
    %v614 = vld [vmem:[%s4 + $0xb0] sm:$0xff]
    %v615 = vld [vmem:[%s4 + $0xb8] sm:$0xff]
    %617 = vset.pattern.permute.xlu0 0
    %618 = vperm.xlu0 %617, %v592
    %v619 = vpop.permute.xlu0 %618
    %622 = vset.pattern.permute.xlu0 0
    %623 = vperm.xlu0 %622, %v593
    %v624 = vpop.permute.xlu0 %623
    %627 = vset.pattern.permute.xlu0 0
    %628 = vperm.xlu0 %627, %v594
    %v629 = vpop.permute.xlu0 %628
    %632 = vset.pattern.permute.xlu0 0
    %633 = vperm.xlu0 %632, %v595
    %v634 = vpop.permute.xlu0 %633
    %637 = vset.pattern.permute.xlu0 0
    %638 = vperm.xlu0 %637, %v596
    %v639 = vpop.permute.xlu0 %638
    %642 = vset.pattern.permute.xlu0 0
    %643 = vperm.xlu0 %642, %v597
    %v644 = vpop.permute.xlu0 %643
    %647 = vset.pattern.permute.xlu0 0
    %648 = vperm.xlu0 %647, %v598
    %v649 = vpop.permute.xlu0 %648
    %652 = vset.pattern.permute.xlu0 0
    %653 = vperm.xlu0 %652, %v599
    %v654 = vpop.permute.xlu0 %653
    %657 = vset.pattern.permute.xlu0 0
    %658 = vperm.xlu0 %657, %v600
    %v659 = vpop.permute.xlu0 %658
    %662 = vset.pattern.permute.xlu0 0
    %663 = vperm.xlu0 %662, %v601
    %v664 = vpop.permute.xlu0 %663
    %667 = vset.pattern.permute.xlu0 0
    %668 = vperm.xlu0 %667, %v602
    %v669 = vpop.permute.xlu0 %668
    %672 = vset.pattern.permute.xlu0 0
    %673 = vperm.xlu0 %672, %v603
    %v674 = vpop.permute.xlu0 %673
    %677 = vset.pattern.permute.xlu0 0
    %678 = vperm.xlu0 %677, %v604
    %v679 = vpop.permute.xlu0 %678
    %682 = vset.pattern.permute.xlu0 0
    %683 = vperm.xlu0 %682, %v605
    %v684 = vpop.permute.xlu0 %683
    %687 = vset.pattern.permute.xlu0 0
    %688 = vperm.xlu0 %687, %v606
    %v689 = vpop.permute.xlu0 %688
    %692 = vset.pattern.permute.xlu0 0
    %693 = vperm.xlu0 %692, %v607
    %v694 = vpop.permute.xlu0 %693
    %697 = vset.pattern.permute.xlu0 0
    %698 = vperm.xlu0 %697, %v608
    %v699 = vpop.permute.xlu0 %698
    %702 = vset.pattern.permute.xlu0 0
    %703 = vperm.xlu0 %702, %v609
    %v704 = vpop.permute.xlu0 %703
    %707 = vset.pattern.permute.xlu0 0
    %708 = vperm.xlu0 %707, %v610
    %v709 = vpop.permute.xlu0 %708
    %712 = vset.pattern.permute.xlu0 0
    %713 = vperm.xlu0 %712, %v611
    %v714 = vpop.permute.xlu0 %713
    %717 = vset.pattern.permute.xlu0 0
    %718 = vperm.xlu0 %717, %v612
    %v719 = vpop.permute.xlu0 %718
    %722 = vset.pattern.permute.xlu0 0
    %723 = vperm.xlu0 %722, %v613
    %v724 = vpop.permute.xlu0 %723
    %727 = vset.pattern.permute.xlu0 0
    %728 = vperm.xlu0 %727, %v614
    %v729 = vpop.permute.xlu0 %728
    %732 = vset.pattern.permute.xlu0 0
    %733 = vperm.xlu0 %732, %v615
    %v734 = vpop.permute.xlu0 %733
    %v760 = vunpack.c.l.b16 %v567
    %v761 = vunpack.c.l.b16 %v568
    %v762 = vunpack.c.l.b16 %v569
    %v763 = vunpack.c.l.b16 %v570
    %v764 = vunpack.c.l.b16 %v571
    %v765 = vunpack.c.l.b16 %v572
    %v766 = vunpack.c.l.b16 %v573
    %v767 = vunpack.c.l.b16 %v574
    %v768 = vunpack.c.l.b16 %v575
    %v769 = vunpack.c.l.b16 %v576
    %v770 = vunpack.c.l.b16 %v577
    %v771 = vunpack.c.l.b16 %v578
    %v772 = vunpack.c.l.b16 %v579
    %v773 = vunpack.c.l.b16 %v580
    %v774 = vunpack.c.l.b16 %v581
    %v775 = vunpack.c.l.b16 %v582
    %v776 = vunpack.c.l.b16 %v583
    %v777 = vunpack.c.l.b16 %v584
    %v778 = vunpack.c.l.b16 %v585
    %v779 = vunpack.c.l.b16 %v586
    %v780 = vunpack.c.l.b16 %v587
    %v781 = vunpack.c.l.b16 %v588
    %v782 = vunpack.c.l.b16 %v589
    %v783 = vunpack.c.l.b16 %v590
    %v784 = vpack.c.b16 %v761, %v760
    %v785 = vpack.c.b16 %v763, %v762
    %v786 = vpack.c.b16 %v765, %v764
    %v787 = vpack.c.b16 %v767, %v766
    %v788 = vpack.c.b16 %v769, %v768
    %v789 = vpack.c.b16 %v771, %v770
    %v790 = vpack.c.b16 %v773, %v772
    %v791 = vpack.c.b16 %v775, %v774
    %v792 = vpack.c.b16 %v777, %v776
    %v793 = vpack.c.b16 %v779, %v778
    %v794 = vpack.c.b16 %v781, %v780
    %v795 = vpack.c.b16 %v783, %v782
    %vm796 = vcmask 130048
    %v798 = vsel %vm796, %v784, 0
    %v801 = vsel %vm796, %v785, 0
    %v804 = vsel %vm796, %v786, 0
    %v807 = vsel %vm796, %v787, 0
    %v810 = vsel %vm796, %v788, 0
    %v813 = vsel %vm796, %v789, 0
    %v816 = vsel %vm796, %v790, 0
    %v819 = vsel %vm796, %v791, 0
    %v822 = vsel %vm796, %v792, 0
    %v825 = vsel %vm796, %v793, 0
    %v828 = vsel %vm796, %v794, 0
    %v831 = vsel %vm796, %v795, 0
    %833 = vmatprep.subr.bf16.mxu0 0
    %834 = vmatpush1.bf16.msra.mxu0 %v591
    %835 = vmatprep.subr.bf16.mxu0 0
    %836 = vmatpush1.bf16.msra.mxu0 0
    %837 = vmatprep.subr.bf16.mxu0 0
    %838 = vmatpush1.bf16.msra.mxu0 0
    %839 = vmatprep.subr.bf16.mxu0 0
    %840 = vmatpush1.bf16.msra.mxu0 0
    %841 = vmatprep.subr.bf16.mxu0 0
    %842 = vmatpush1.bf16.msra.mxu0 0
    %843 = vmatprep.subr.bf16.mxu0 0
    %844 = vmatpush1.bf16.msra.mxu0 0
    %845 = vmatprep.subr.bf16.mxu0 0
    %846 = vmatpush1.bf16.msra.mxu0 0
    %847 = vmatprep.subr.bf16.mxu0 0
    %848 = vmatpush1.bf16.msra.mxu0 0
    %849 = vmatprep.subr.bf16.mxu0 0
    %850 = vmatpush1.bf16.msra.mxu0 0
    %851 = vmatprep.subr.bf16.mxu0 0
    %852 = vmatpush1.bf16.msra.mxu0 0
    %853 = vmatprep.subr.bf16.mxu0 0
    %854 = vmatpush1.bf16.msra.mxu0 0
    %855 = vmatprep.subr.bf16.mxu0 0
    %856 = vmatpush1.bf16.msra.mxu0 0
    %857 = vmatprep.subr.bf16.mxu0 0
    %858 = vmatpush1.bf16.msra.mxu0 0
    %859 = vmatprep.subr.bf16.mxu0 0
    %860 = vmatpush1.bf16.msra.mxu0 0
    %861 = vmatprep.subr.bf16.mxu0 0
    %862 = vmatpush1.bf16.msra.mxu0 0
    %863 = vmatprep.subr.bf16.mxu0 0
    %864 = vmatpush1.bf16.msra.mxu0 0
    %865 = vmatprep.mubr.bf16.mxu0 0
    %866 = vmatmul.mubr.bf16.gmra.mrb[0].mxu0 %v798
    %v867 = vpop.f32.mrb[0].mxu0
    %v868 = vadd.f32 %v619, %v867
    %v869 = vpop.f32.mrb[0].mxu0
    %v870 = vpop.f32.mrb[0].mxu0
    %v871 = vadd.f32 %v624, %v870
    %v872 = vpop.f32.mrb[0].mxu0
    %873 = vmatprep.mubr.bf16.mxu0 0
    %874 = vmatmul.mubr.bf16.gmra.mrb[0].mxu0 %v801
    %v875 = vpop.f32.mrb[0].mxu0
    %v876 = vadd.f32 %v629, %v875
    %v877 = vpop.f32.mrb[0].mxu0
    %v878 = vpop.f32.mrb[0].mxu0
    %v879 = vadd.f32 %v634, %v878
    %v880 = vpop.f32.mrb[0].mxu0
    %881 = vmatprep.mubr.bf16.mxu0 0
    %882 = vmatmul.mubr.bf16.gmra.mrb[0].mxu0 %v804
    %v883 = vpop.f32.mrb[0].mxu0
    %v884 = vadd.f32 %v639, %v883
    %v885 = vpop.f32.mrb[0].mxu0
    %v886 = vpop.f32.mrb[0].mxu0
    %v887 = vadd.f32 %v644, %v886
    %v888 = vpop.f32.mrb[0].mxu0
    %889 = vmatprep.mubr.bf16.mxu0 0
    %890 = vmatmul.mubr.bf16.gmra.mrb[0].mxu0 %v807
    %v891 = vpop.f32.mrb[0].mxu0
    %v892 = vadd.f32 %v649, %v891
    %v893 = vpop.f32.mrb[0].mxu0
    %v894 = vpop.f32.mrb[0].mxu0
    %v895 = vadd.f32 %v654, %v894
    %v896 = vpop.f32.mrb[0].mxu0
    %897 = vmatprep.mubr.bf16.mxu0 0
    %898 = vmatmul.mubr.bf16.gmra.mrb[0].mxu0 %v810
    %v899 = vpop.f32.mrb[0].mxu0
    %v900 = vadd.f32 %v659, %v899
    %v901 = vpop.f32.mrb[0].mxu0
    %v902 = vpop.f32.mrb[0].mxu0
    %v903 = vadd.f32 %v664, %v902
    %v904 = vpop.f32.mrb[0].mxu0
    %905 = vmatprep.mubr.bf16.mxu0 0
    %906 = vmatmul.mubr.bf16.gmra.mrb[0].mxu0 %v813
    %v907 = vpop.f32.mrb[0].mxu0
    %v908 = vadd.f32 %v669, %v907
    %v909 = vpop.f32.mrb[0].mxu0
    %v910 = vpop.f32.mrb[0].mxu0
    %v911 = vadd.f32 %v674, %v910
    %v912 = vpop.f32.mrb[0].mxu0
    %913 = vmatprep.mubr.bf16.mxu0 0
    %914 = vmatmul.mubr.bf16.gmra.mrb[0].mxu0 %v816
    %v915 = vpop.f32.mrb[0].mxu0
    %v916 = vadd.f32 %v679, %v915
    %v917 = vpop.f32.mrb[0].mxu0
    %v918 = vpop.f32.mrb[0].mxu0
    %v919 = vadd.f32 %v684, %v918
    %v920 = vpop.f32.mrb[0].mxu0
    %921 = vmatprep.mubr.bf16.mxu0 0
    %922 = vmatmul.mubr.bf16.gmra.mrb[0].mxu0 %v819
    %v923 = vpop.f32.mrb[0].mxu0
    %v924 = vadd.f32 %v689, %v923
    %v925 = vpop.f32.mrb[0].mxu0
    %v926 = vpop.f32.mrb[0].mxu0
    %v927 = vadd.f32 %v694, %v926
    %v928 = vpop.f32.mrb[0].mxu0
    %929 = vmatprep.mubr.bf16.mxu0 0
    %930 = vmatmul.mubr.bf16.gmra.mrb[0].mxu0 %v822
    %v931 = vpop.f32.mrb[0].mxu0
    %v932 = vadd.f32 %v699, %v931
    %v933 = vpop.f32.mrb[0].mxu0
    %v934 = vpop.f32.mrb[0].mxu0
    %v935 = vadd.f32 %v704, %v934
    %v936 = vpop.f32.mrb[0].mxu0
    %937 = vmatprep.mubr.bf16.mxu0 0
    %938 = vmatmul.mubr.bf16.gmra.mrb[0].mxu0 %v825
    %v939 = vpop.f32.mrb[0].mxu0
    %v940 = vadd.f32 %v709, %v939
    %v941 = vpop.f32.mrb[0].mxu0
    %v942 = vpop.f32.mrb[0].mxu0
    %v943 = vadd.f32 %v714, %v942
    %v944 = vpop.f32.mrb[0].mxu0
    %945 = vmatprep.mubr.bf16.mxu0 0
    %946 = vmatmul.mubr.bf16.gmra.mrb[0].mxu0 %v828
    %v947 = vpop.f32.mrb[0].mxu0
    %v948 = vadd.f32 %v719, %v947
    %v949 = vpop.f32.mrb[0].mxu0
    %v950 = vpop.f32.mrb[0].mxu0
    %v951 = vadd.f32 %v724, %v950
    %v952 = vpop.f32.mrb[0].mxu0
    %953 = vmatprep.mubr.bf16.mxu0 0
    %954 = vmatmul.mubr.bf16.gmra.mrb[0].mxu0 %v831
    %v955 = vpop.f32.mrb[0].mxu0
    %v956 = vadd.f32 %v729, %v955
    %v957 = vpop.f32.mrb[0].mxu0
    %v958 = vpop.f32.mrb[0].mxu0
    %v959 = vadd.f32 %v734, %v958
    %v960 = vpop.f32.mrb[0].mxu0
    %961 = vdwg.mxu0
    %v962 = vxor.u32 %v868, 2147483648
    %v963 = vxor.u32 %v871, 2147483648
    %v964 = vxor.u32 %v876, 2147483648
    %v965 = vxor.u32 %v879, 2147483648
    %v966 = vxor.u32 %v884, 2147483648
    %v967 = vxor.u32 %v887, 2147483648
    %v968 = vxor.u32 %v892, 2147483648
    %v969 = vxor.u32 %v895, 2147483648
    %v970 = vmul.f32 %v962, 1.442695
    %v971 = vpow.pop %v970
    %v972 = vmul.f32 %v963, 1.442695
    %v973 = vpow.pop %v972
    %v974 = vmul.f32 %v964, 1.442695
    %v975 = vpow.pop %v974
    %v976 = vmul.f32 %v965, 1.442695
    %v977 = vpow.pop %v976
    %v978 = vmul.f32 %v966, 1.442695
    %v979 = vpow.pop %v978
    %v980 = vmul.f32 %v967, 1.442695
    %v981 = vpow.pop %v980
    %v982 = vmul.f32 %v968, 1.442695
    %v983 = vpow.pop %v982
    %v984 = vmul.f32 %v969, 1.442695
    %v985 = vpow.pop %v984
    %v986 = vadd.f32 %v971, 1.0
    %v987 = vadd.f32 %v973, 1.0
    %v988 = vadd.f32 %v975, 1.0
    %v989 = vadd.f32 %v977, 1.0
    %v990 = vadd.f32 %v979, 1.0
    %v991 = vadd.f32 %v981, 1.0
    %v992 = vadd.f32 %v983, 1.0
    %v993 = vadd.f32 %v985, 1.0
    %v994 = vrcp.pop %v986
    %v995 = vmul.f32 1.0, %v994
    %v996 = vrcp.pop %v987
    %v997 = vmul.f32 1.0, %v996
    %v998 = vrcp.pop %v988
    %v999 = vmul.f32 1.0, %v998
    %v1000 = vrcp.pop %v989
    %v1001 = vmul.f32 1.0, %v1000
    %v1002 = vrcp.pop %v990
    %v1003 = vmul.f32 1.0, %v1002
    %v1004 = vrcp.pop %v991
    %v1005 = vmul.f32 1.0, %v1004
    %v1006 = vrcp.pop %v992
    %v1007 = vmul.f32 1.0, %v1006
    %v1008 = vrcp.pop %v993
    %v1009 = vmul.f32 1.0, %v1008
    %v1010 = vtanh.pop %v900
    %v1011 = vtanh.pop %v903
    %v1012 = vtanh.pop %v908
    %v1013 = vtanh.pop %v911
    %v1014 = vtanh.pop %v916
    %v1015 = vtanh.pop %v919
    %v1016 = vtanh.pop %v924
    %v1017 = vtanh.pop %v927
    %v1018 = vxor.u32 %v932, 2147483648
    %v1019 = vxor.u32 %v935, 2147483648
    %v1020 = vxor.u32 %v940, 2147483648
    %v1021 = vxor.u32 %v943, 2147483648
    %v1022 = vxor.u32 %v948, 2147483648
    %v1023 = vxor.u32 %v951, 2147483648
    %v1024 = vxor.u32 %v956, 2147483648
    %v1025 = vxor.u32 %v959, 2147483648
    %v1026 = vmul.f32 %v1018, 1.442695
    %v1027 = vpow.pop %v1026
    %v1028 = vmul.f32 %v1019, 1.442695
    %v1029 = vpow.pop %v1028
    %v1030 = vmul.f32 %v1020, 1.442695
    %v1031 = vpow.pop %v1030
    %v1032 = vmul.f32 %v1021, 1.442695
    %v1033 = vpow.pop %v1032
    %v1034 = vmul.f32 %v1022, 1.442695
    %v1035 = vpow.pop %v1034
    %v1036 = vmul.f32 %v1023, 1.442695
    %v1037 = vpow.pop %v1036
    %v1038 = vmul.f32 %v1024, 1.442695
    %v1039 = vpow.pop %v1038
    %v1040 = vmul.f32 %v1025, 1.442695
    %v1041 = vpow.pop %v1040
    %v1042 = vadd.f32 %v1027, 1.0
    %v1043 = vadd.f32 %v1029, 1.0
    %v1044 = vadd.f32 %v1031, 1.0
    %v1045 = vadd.f32 %v1033, 1.0
    %v1046 = vadd.f32 %v1035, 1.0
    %v1047 = vadd.f32 %v1037, 1.0
    %v1048 = vadd.f32 %v1039, 1.0
    %v1049 = vadd.f32 %v1041, 1.0
    %v1050 = vrcp.pop %v1042
    %v1051 = vmul.f32 1.0, %v1050
    %v1052 = vrcp.pop %v1043
    %v1053 = vmul.f32 1.0, %v1052
    %v1054 = vrcp.pop %v1044
    %v1055 = vmul.f32 1.0, %v1054
    %v1056 = vrcp.pop %v1045
    %v1057 = vmul.f32 1.0, %v1056
    %v1058 = vrcp.pop %v1046
    %v1059 = vmul.f32 1.0, %v1058
    %v1060 = vrcp.pop %v1047
    %v1061 = vmul.f32 1.0, %v1060
    %v1062 = vrcp.pop %v1048
    %v1063 = vmul.f32 1.0, %v1062
    %v1064 = vrcp.pop %v1049
    %v1065 = vmul.f32 1.0, %v1064
    %v1066 = vmul.f32 %v995, %v1010
    %v1067 = vmul.f32 %v997, %v1011
    %v1068 = vmul.f32 %v999, %v1012
    %v1069 = vmul.f32 %v1001, %v1013
    %v1070 = vmul.f32 %v1003, %v1014
    %v1071 = vmul.f32 %v1005, %v1015
    %v1072 = vmul.f32 %v1007, %v1016
    %v1073 = vmul.f32 %v1009, %v1017
    %v1074 = vtanh.pop %v1066
    %v1075 = vtanh.pop %v1067
    %v1076 = vtanh.pop %v1068
    %v1077 = vtanh.pop %v1069
    %v1078 = vtanh.pop %v1070
    %v1079 = vtanh.pop %v1071
    %v1080 = vtanh.pop %v1072
    %v1081 = vtanh.pop %v1073
    %v1082 = vmul.f32 %v1051, %v1074
    %v1083 = vmul.f32 %v1053, %v1075
    %v1084 = vmul.f32 %v1055, %v1076
    %v1085 = vmul.f32 %v1057, %v1077
    %v1086 = vmul.f32 %v1059, %v1078
    %v1087 = vmul.f32 %v1061, %v1079
    %v1088 = vmul.f32 %v1063, %v1080
    %v1089 = vmul.f32 %v1065, %v1081
    %v1090 = vtanh.pop %v1082
    %v1091 = vtanh.pop %v1083
    %v1092 = vtanh.pop %v1084
    %v1093 = vtanh.pop %v1085
    %v1094 = vtanh.pop %v1086
    %v1095 = vtanh.pop %v1087
    %v1096 = vtanh.pop %v1088
    %v1097 = vtanh.pop %v1089
    %v1098 = vld [vmem:[%s5] sm:$0x1]
    %v1099 = vpack.c.bf16 %v1091, %v1090
    %v1100 = vpack.c.bf16 %v1093, %v1092
    %v1101 = vpack.c.bf16 %v1095, %v1094
    %v1102 = vpack.c.bf16 %v1097, %v1096
    %s1103 = sld [smem:[#allocation2]]
    %v1104 = vstv %s1103
    %vm1105 = vcmask 523264
    %v1107 = vsel %vm1105, %v1098, 0
    %1109 = vmatprep.subr.bf16.mxu0 0
    %1110 = vmatpush1.bf16.msra.mxu0 %v1099
    %1111 = vmatprep.subr.bf16.mxu0 0
    %1112 = vmatpush1.bf16.msra.mxu0 %v1100
    %1113 = vmatprep.subr.bf16.mxu0 0
    %1114 = vmatpush1.bf16.msra.mxu0 %v1101
    %1115 = vmatprep.subr.bf16.mxu0 0
    %1116 = vmatpush1.bf16.msra.mxu0 %v1102
    %1117 = vmatprep.subr.bf16.mxu0 0
    %1118 = vmatpush1.bf16.msra.mxu0 0
    %1119 = vmatprep.subr.bf16.mxu0 0
    %1120 = vmatpush1.bf16.msra.mxu0 0
    %1121 = vmatprep.subr.bf16.mxu0 0
    %1122 = vmatpush1.bf16.msra.mxu0 0
    %1123 = vmatprep.subr.bf16.mxu0 0
    %1124 = vmatpush1.bf16.msra.mxu0 0
    %1125 = vmatprep.subr.bf16.mxu0 0
    %1126 = vmatpush1.bf16.msra.mxu0 0
    %1127 = vmatprep.subr.bf16.mxu0 0
    %1128 = vmatpush1.bf16.msra.mxu0 0
    %1129 = vmatprep.subr.bf16.mxu0 0
    %1130 = vmatpush1.bf16.msra.mxu0 0
    %1131 = vmatprep.subr.bf16.mxu0 0
    %1132 = vmatpush1.bf16.msra.mxu0 0
    %1133 = vmatprep.subr.bf16.mxu0 0
    %1134 = vmatpush1.bf16.msra.mxu0 0
    %1135 = vmatprep.subr.bf16.mxu0 0
    %1136 = vmatpush1.bf16.msra.mxu0 0
    %1137 = vmatprep.subr.bf16.mxu0 0
    %1138 = vmatpush1.bf16.msra.mxu0 0
    %1139 = vmatprep.subr.bf16.mxu0 0
    %1140 = vmatpush1.bf16.msra.mxu0 0
    %1141 = vmatprep.mubr.bf16.mxu0 0
    %1142 = vmatmul.mubr.bf16.gmra.mrb[0].mxu0 %v1107
    %v1143 = vpop.f32.mrb[0].mxu0
    %v1144 = vadd.f32 %v1104, %v1143
    %v1145 = vpop.f32.mrb[0].mxu0
    %v1146 = vpop.f32.mrb[0].mxu0
    %v1147 = vpop.f32.mrb[0].mxu0
    %1148 = vdwg.mxu0
    %v1149 = vtanh.pop %v1144
    %1150 = vst [vmem:[#allocation6] sm:$0x1] %v1149
    // Predicated region
    $region34: #{tpu_custom_call.1} parent=1 // pred_check
      _
    $region35: #{tpu_custom_call.1} parent=1 // pred_check_branch
      %1152 = sbr.rel (0) target = $region37
    $region36: #{tpu_custom_call.1} parent=1 // pred_region
      %s1154 = ssub.s32 16, 16
      %1155 = vsyncadd [#allocation4], %s1154
      %s1157 = sshll.u32 [#allocation6], 4
      %s1158 = int_to_ptr.vmem [resolvable:$true] %s1157
      %1160 = dma.vmem_to_hbm [thread:$0]  %s1158, 16, %s7, [#allocation4]
    $region37: #{tpu_custom_call.1} parent=1 // pred_fallthru
      _
    // Predicated region
    $region38: #{tpu_custom_call.1} parent=1 // pred_check
      _
    $region39: #{tpu_custom_call.1} parent=1 // pred_check_branch
      %1162 = sbr.rel (0) target = $region41
    $region40: #{tpu_custom_call.1} parent=1 // pred_region
      %1163 = dma.done [#allocation4], 16
    $region41: #{tpu_custom_call.1} parent=1 // pred_fallthru
      _
    %1164 = vsyncpa [#allocation4], 1
    %1165 = vsyncpa [#allocation5], 1

</llo_original>
